<compile_context>
chip_gen: v7x
topology: tpu7x:2x2x1
jax: 0.10.0
libtpu: 0.0.40
codegen_flags: <defaults>
</compile_context>

<pallas_src>
import functools

import jax
import jax.numpy as jnp
from jax.experimental import pallas as pl
from jax.experimental.pallas import tpu as pltpu

# Hyper-parameters implied by the module's __init__ (small & TPU-friendly).
INPUT_SIZE = 16
HIDDEN_SIZE = 32          # 4*H = 128 -> gates fill exactly one lane register
OUTPUT_SIZE = 4
NUM_LAYERS = 2            # kernel below is specialized to the 2-layer wavefront
DROPOUT_RATE = 0.2        # nn.Dropout / inter-layer LSTM dropout: identity in eval

BATCH = 2
SEQ_LEN = 8
LANE = 128                # lane-padded fc output width (unmasked store)


# --------------------------------------------------------------------------- #
# Kernel
# --------------------------------------------------------------------------- #
def _lstm_model_kernel(x_ref, wih0_ref, whh0_ref, b0_ref,
                       wstk1_ref, b1_ref, wfc_ref, bfc_ref, out_ref,
                       *, batch, seq_len, hidden):
    """Fused 2-layer LSTM + last step + Linear.

    x_ref    : (T*B, F)  time-major input (row = t*B + b), bf16.
    wih0_ref : (F, 4H)   layer-0 W_ih^T, gate cols permuted [i,f,o,g], pre-scaled, bf16.
    whh0_ref : (H, 4H)   layer-0 W_hh^T, permuted/pre-scaled, bf16.
    b0_ref   : (1, 4H)   layer-0 b_ih+b_hh, permuted/pre-scaled, f32.
    wstk1_ref: (2H, 4H)  layer-1 [W_ih^T ; W_hh^T] stacked, permuted/pre-scaled, bf16.
    b1_ref   : (1, 4H)   layer-1 combined bias, f32.
    wfc_ref  : (H, 128)  fc weight^T, zero-padded to 128 lanes, bf16.
    bfc_ref  : (1, 128)  fc bias, zero-padded, f32.
    out_ref  : (B, 128)  f32 output (first OUTPUT_SIZE lanes are real).
    """
    B, T, H = batch, seq_len, hidden
    f32, bf16 = jnp.float32, jnp.bfloat16

    whh0 = whh0_ref[...]                  # loaded once, loop-invariant
    wstk1 = wstk1_ref[...]
    wih1 = wstk1[:H, :]                   # static slice: W_ih half (for t=0, h1_{-1}=0)
    b0 = b0_ref[...]
    b1 = b1_ref[...]

    # Hoisted layer-0 input projection for ALL T steps: one MXU matmul, bias folded.
    xp0 = jnp.dot(x_ref[...], wih0_ref[...], preferred_element_type=f32) + b0  # (T*B, 4H)

    def activate(gates, c_prev):
        # Gate columns were pre-permuted to [i, f, o, g] and the sigmoid-gate
        # (i,f,o) columns of W/b were pre-scaled by 0.5, so a SINGLE full-vreg
        # tanh gives tanh(x/2) for i/f/o and tanh(x) for g; sigmoid is then the
        # cheap VPU combine 0.5*tanh(x/2)+0.5 (one EUP round-trip per step).
        th = jnp.tanh(gates)
        sg = th * 0.5 + 0.5
        i_g = sg[:, 0 * H:1 * H]
        f_g = sg[:, 1 * H:2 * H]
        o_g = sg[:, 2 * H:3 * H]
        g_g = th[:, 3 * H:4 * H]
        c = i_g * g_g if c_prev is None else f_g * c_prev + i_g * g_g
        h = o_g * jnp.tanh(c)
        return h, c

    def l0_step(t, h_prev, c_prev):
        g = xp0[t * B:(t + 1) * B, :]                       # contiguous (B, 4H) slice
        if h_prev is not None:                              # t == 0: h0 = 0
            g = g + jnp.dot(h_prev.astype(bf16), whh0, preferred_element_type=f32)
        return activate(g, c_prev)

    def l1_step(h_below, h_prev, c_prev):
        if h_prev is None:                                  # t == 0: h1_{-1} = 0
            g = jnp.dot(h_below.astype(bf16), wih1, preferred_element_type=f32) + b1
        else:                                               # single MXU push per step
            hh = jnp.concatenate([h_below, h_prev], axis=1).astype(bf16)   # (B, 2H)
            g = jnp.dot(hh, wstk1, preferred_element_type=f32) + b1
        return activate(g, c_prev)

    # Wavefront schedule: layer-1 step t only depends on h0_t, so it is issued in
    # the same unrolled block as layer-0 step t+1 -> the scheduler overlaps
    # layer-0 MXU work with layer-1 EUP/VPU work; no barrier between the layers.
    h0, c0 = l0_step(0, None, None)
    h1 = c1 = None
    for t in range(T):
        nxt = l0_step(t + 1, h0, c0) if t + 1 < T else None
        h1, c1 = l1_step(h0, h1, c1)
        if nxt is not None:
            h0, c0 = nxt

    # lstm_out[:, -1, :] -> Dropout (identity at inference) -> Linear.
    # fc weight/bias are lane-padded to 128 so this is a full, unmasked store.
    out_ref[...] = (jnp.dot(h1.astype(bf16), wfc_ref[...], preferred_element_type=f32)
                    + bfc_ref[...])


# --------------------------------------------------------------------------- #
# Wrapper
# --------------------------------------------------------------------------- #
def _cost_estimate(B, T, F, H, O):
    GH = 4 * H
    flops = 2 * T * B * F * GH                    # hoisted layer-0 projection
    flops += 2 * (T - 1) * B * H * GH             # layer-0 recurrent matmuls
    flops += 2 * B * H * GH                       # layer-1 step 0 (W_ih half)
    flops += 2 * (T - 1) * B * (2 * H) * GH       # layer-1 fused [h0|h1] matmuls
    flops += 2 * B * H * LANE                     # lane-padded fc
    transcendentals = NUM_LAYERS * T * B * (GH + H)   # tanh(gates) + tanh(c) per step
    bytes_accessed = (2 * T * B * F                                   # bf16 input
                      + 2 * (F * GH + H * GH + 2 * H * GH + H * LANE)  # bf16 weights
                      + 4 * (2 * GH + LANE)                            # f32 biases
                      + 4 * B * LANE)                                  # f32 output
    return pl.CostEstimate(flops=flops, transcendentals=transcendentals,
                           bytes_accessed=bytes_accessed)


@jax.jit
def lstm_model_forward(x_btf, p):
    """x_btf: (B, T, INPUT_SIZE) batch_first; p: output of prepare_params()."""
    B, T, F = x_btf.shape
    H, O = HIDDEN_SIZE, OUTPUT_SIZE

    # batch-first -> time-major in the wrapper (free for a ~2 KB tensor); the
    # kernel then uses a single contiguous xp0[t*B:(t+1)*B] slice per step.
    x_tm = jnp.transpose(x_btf, (1, 0, 2)).reshape(T * B, F).astype(jnp.bfloat16)

    kernel = functools.partial(_lstm_model_kernel, batch=B, seq_len=T, hidden=H)
    out_pad = pl.pallas_call(
        kernel,
        out_shape=jax.ShapeDtypeStruct((B, LANE), jnp.float32),
        in_specs=[pl.BlockSpec(memory_space=pltpu.MemorySpace.VMEM)] * 8,
        out_specs=pl.BlockSpec(memory_space=pltpu.MemorySpace.VMEM),
        cost_estimate=_cost_estimate(B, T, F, H, O),
    )(x_tm, p["wih0"], p["whh0"], p["b0"], p["wstk1"], p["b1"], p["wfc"], p["bfc"])
    return out_pad[:, :O]   # slice off the lane padding


# --------------------------------------------------------------------------- #
# Parameter construction (PyTorch layout -> kernel layout)
# --------------------------------------------------------------------------- #
def init_raw_params(key):
    """PyTorch-layout LSTM/Linear weights, U(-1/sqrt(H), 1/sqrt(H))."""
    k = HIDDEN_SIZE ** -0.5
    keys = jax.random.split(key, NUM_LAYERS * 4 + 2)
    ki = 0
    lstm = []
    for layer in range(NUM_LAYERS):
        in_f = INPUT_SIZE if layer == 0 else HIDDEN_SIZE
        w_ih = jax.random.uniform(keys[ki], (4 * HIDDEN_SIZE, in_f), jnp.float32, -k, k); ki += 1
        w_hh = jax.random.uniform(keys[ki], (4 * HIDDEN_SIZE, HIDDEN_SIZE), jnp.float32, -k, k); ki += 1
        b_ih = jax.random.uniform(keys[ki], (4 * HIDDEN_SIZE,), jnp.float32, -k, k); ki += 1
        b_hh = jax.random.uniform(keys[ki], (4 * HIDDEN_SIZE,), jnp.float32, -k, k); ki += 1
        lstm.append((w_ih, w_hh, b_ih, b_hh))
    w_fc = jax.random.uniform(keys[ki], (OUTPUT_SIZE, HIDDEN_SIZE), jnp.float32, -k, k); ki += 1
    b_fc = jax.random.uniform(keys[ki], (OUTPUT_SIZE,), jnp.float32, -k, k); ki += 1
    return {"lstm": lstm, "fc": (w_fc, b_fc)}


def _permute_and_prescale(w_t, b):
    """Reorder gate columns i,f,g,o -> i,f,o,g and pre-scale the sigmoid-gate
    (i,f,o) columns by 0.5 so the kernel uses one full-vreg tanh per step."""
    H = HIDDEN_SIZE
    perm = jnp.concatenate([jnp.arange(0, 2 * H), jnp.arange(3 * H, 4 * H),
                            jnp.arange(2 * H, 3 * H)])
    scale = jnp.concatenate([jnp.full((3 * H,), 0.5, jnp.float32),
                             jnp.ones((H,), jnp.float32)])
    return w_t[:, perm] * scale[None, :], b[perm] * scale


def prepare_params(raw):
    """One-time, wrapper-side weight preprocessing (transpose / permute / scale /
    stack / pad / bf16-cast)."""
    H, O = HIDDEN_SIZE, OUTPUT_SIZE
    (wih0, whh0, bih0, bhh0), (wih1, whh1, bih1, bhh1) = raw["lstm"]
    zeros_b = jnp.zeros((4 * H,), jnp.float32)

    wih0_t, b0 = _permute_and_prescale(wih0.T, bih0 + bhh0)
    whh0_t, _ = _permute_and_prescale(whh0.T, zeros_b)
    wih1_t, b1 = _permute_and_prescale(wih1.T, bih1 + bhh1)
    whh1_t, _ = _permute_and_prescale(whh1.T, zeros_b)

    w_fc, b_fc = raw["fc"]
    wfc_pad = jnp.zeros((H, LANE), jnp.float32).at[:, :O].set(w_fc.T)
    bfc_pad = jnp.zeros((1, LANE), jnp.float32).at[:, :O].set(b_fc[None, :])

    return {
        "wih0": wih0_t.astype(jnp.bfloat16),                          # (F, 4H)
        "whh0": whh0_t.astype(jnp.bfloat16),                          # (H, 4H)
        "b0": b0.reshape(1, 4 * H),                                   # (1, 4H) f32
        "wstk1": jnp.concatenate([wih1_t, whh1_t], axis=0).astype(jnp.bfloat16),  # (2H, 4H)
        "b1": b1.reshape(1, 4 * H),                                   # (1, 4H) f32
        "wfc": wfc_pad.astype(jnp.bfloat16),                          # (H, 128)
        "bfc": bfc_pad,                                               # (1, 128) f32
    }


# --------------------------------------------------------------------------- #
# Pure-JAX reference (PyTorch nn.LSTM / nn.Linear eval-mode semantics)
# --------------------------------------------------------------------------- #
def reference_forward(x, raw):
    B, T, _ = x.shape
    H = HIDDEN_SIZE
    layer_in = x
    for (w_ih, w_hh, b_ih, b_hh) in raw["lstm"]:
        ht = jnp.zeros((B, H), jnp.float32)
        ct = jnp.zeros((B, H), jnp.float32)
        outs = []
        for t in range(T):
            g = layer_in[:, t, :] @ w_ih.T + b_ih + ht @ w_hh.T + b_hh
            i = jax.nn.sigmoid(g[:, 0 * H:1 * H])
            f = jax.nn.sigmoid(g[:, 1 * H:2 * H])
            gg = jnp.tanh(g[:, 2 * H:3 * H])
            o = jax.nn.sigmoid(g[:, 3 * H:4 * H])
            ct = f * ct + i * gg
            ht = o * jnp.tanh(ct)
            outs.append(ht)
        layer_in = jnp.stack(outs, axis=1)
    w_fc, b_fc = raw["fc"]
    return layer_in[:, -1, :] @ w_fc.T + b_fc


if __name__ == "__main__":
    key = jax.random.PRNGKey(0)
    pkey, xkey = jax.random.split(key)
    raw = init_raw_params(pkey)
    params = prepare_params(raw)
    x = jax.random.normal(xkey, (BATCH, SEQ_LEN, INPUT_SIZE), dtype=jnp.float32)

    pred = jax.block_until_ready(lstm_model_forward(x, params))
    assert pred.shape == (BATCH, OUTPUT_SIZE), pred.shape
    assert bool(jnp.all(jnp.isfinite(pred)))

    # Correctness check against a pure-JAX PyTorch-semantics reference
    # (tolerance covers the bf16 MXU operands; accumulation is f32).
    ref = reference_forward(x, raw)
    err = float(jnp.max(jnp.abs(pred - ref)))
    assert err < 5e-2, f"max |pred - ref| = {err}"
    print("KERNEL_OK")
</pallas_src>

<mosaic_0001>
module attributes {stable_mosaic.version = 11 : i64} {
  func.func @_lstm_model_kernel(%arg0: memref<16x16xbf16, #tpu.memory_space<vmem>>, %arg1: memref<16x128xbf16, #tpu.memory_space<vmem>>, %arg2: memref<32x128xbf16, #tpu.memory_space<vmem>>, %arg3: memref<1x128xf32, #tpu.memory_space<vmem>>, %arg4: memref<64x128xbf16, #tpu.memory_space<vmem>>, %arg5: memref<1x128xf32, #tpu.memory_space<vmem>>, %arg6: memref<32x128xbf16, #tpu.memory_space<vmem>>, %arg7: memref<1x128xf32, #tpu.memory_space<vmem>>, %arg8: memref<2x128xf32, #tpu.memory_space<vmem>>) attributes {dimension_semantics = [], scalar_prefetch = 0 : i64, scratch_operands = 0 : i64, tpu.core_type = #tpu.core_type<tc>} {
    %c0 = arith.constant 0 : index
    %c0_0 = arith.constant 0 : index
    %0 = vector.load %arg2[%c0, %c0_0] : memref<32x128xbf16, #tpu.memory_space<vmem>>, vector<32x128xbf16>
    %c0_1 = arith.constant 0 : index
    %c0_2 = arith.constant 0 : index
    %1 = vector.load %arg4[%c0_1, %c0_2] : memref<64x128xbf16, #tpu.memory_space<vmem>>, vector<64x128xbf16>
    %2 = vector.extract_strided_slice %1 {offsets = [0, 0], sizes = [32, 128], strides = [1, 1]} : vector<64x128xbf16> to vector<32x128xbf16>
    %c0_3 = arith.constant 0 : index
    %c0_4 = arith.constant 0 : index
    %3 = vector.load %arg3[%c0_3, %c0_4] : memref<1x128xf32, #tpu.memory_space<vmem>>, vector<1x128xf32>
    %c0_5 = arith.constant 0 : index
    %c0_6 = arith.constant 0 : index
    %4 = vector.load %arg5[%c0_5, %c0_6] : memref<1x128xf32, #tpu.memory_space<vmem>>, vector<1x128xf32>
    %c0_7 = arith.constant 0 : index
    %c0_8 = arith.constant 0 : index
    %5 = vector.load %arg0[%c0_7, %c0_8] : memref<16x16xbf16, #tpu.memory_space<vmem>>, vector<16x16xbf16>
    %c0_9 = arith.constant 0 : index
    %c0_10 = arith.constant 0 : index
    %6 = vector.load %arg1[%c0_9, %c0_10] : memref<16x128xbf16, #tpu.memory_space<vmem>>, vector<16x128xbf16>
    %cst = arith.constant dense<0.000000e+00> : vector<16x128xf32>
    %7 = tpu.matmul %5, %6, %cst {dimension_numbers = #tpu.dot_dimension_numbers<[1], [0], [0], [1], [0, 0, 1, 1], [], []>} : vector<16x16xbf16>, vector<16x128xbf16>, vector<16x128xf32> -> vector<16x128xf32>
    %8 = vector.broadcast %3 : vector<1x128xf32> to vector<16x128xf32>
    %9 = arith.addf %7, %8 : vector<16x128xf32>
    %10 = vector.extract_strided_slice %9 {offsets = [0, 0], sizes = [2, 128], strides = [1, 1]} : vector<16x128xf32> to vector<2x128xf32>
    %11 = math.tanh %10 : vector<2x128xf32>
    %cst_11 = arith.constant 5.000000e-01 : f32
    %12 = vector.broadcast %cst_11 : f32 to vector<2x128xf32>
    %13 = arith.mulf %11, %12 : vector<2x128xf32>
    %cst_12 = arith.constant 5.000000e-01 : f32
    %14 = vector.broadcast %cst_12 : f32 to vector<2x128xf32>
    %15 = arith.addf %13, %14 : vector<2x128xf32>
    %16 = vector.extract_strided_slice %15 {offsets = [0, 0], sizes = [2, 32], strides = [1, 1]} : vector<2x128xf32> to vector<2x32xf32>
    %17 = vector.extract_strided_slice %15 {offsets = [0, 64], sizes = [2, 32], strides = [1, 1]} : vector<2x128xf32> to vector<2x32xf32>
    %18 = vector.extract_strided_slice %11 {offsets = [0, 96], sizes = [2, 32], strides = [1, 1]} : vector<2x128xf32> to vector<2x32xf32>
    %19 = arith.mulf %16, %18 : vector<2x32xf32>
    %20 = math.tanh %19 : vector<2x32xf32>
    %21 = arith.mulf %17, %20 : vector<2x32xf32>
    %22 = vector.extract_strided_slice %9 {offsets = [2, 0], sizes = [2, 128], strides = [1, 1]} : vector<16x128xf32> to vector<2x128xf32>
    %23 = arith.truncf %21 : vector<2x32xf32> to vector<2x32xbf16>
    %cst_13 = arith.constant dense<0.000000e+00> : vector<2x128xf32>
    %24 = tpu.matmul %23, %0, %cst_13 {dimension_numbers = #tpu.dot_dimension_numbers<[1], [0], [0], [1], [0, 0, 1, 1], [], []>} : vector<2x32xbf16>, vector<32x128xbf16>, vector<2x128xf32> -> vector<2x128xf32>
    %25 = arith.addf %22, %24 : vector<2x128xf32>
    %26 = math.tanh %25 : vector<2x128xf32>
    %cst_14 = arith.constant 5.000000e-01 : f32
    %27 = vector.broadcast %cst_14 : f32 to vector<2x128xf32>
    %28 = arith.mulf %26, %27 : vector<2x128xf32>
    %cst_15 = arith.constant 5.000000e-01 : f32
    %29 = vector.broadcast %cst_15 : f32 to vector<2x128xf32>
    %30 = arith.addf %28, %29 : vector<2x128xf32>
    %31 = vector.extract_strided_slice %30 {offsets = [0, 0], sizes = [2, 32], strides = [1, 1]} : vector<2x128xf32> to vector<2x32xf32>
    %32 = vector.extract_strided_slice %30 {offsets = [0, 32], sizes = [2, 32], strides = [1, 1]} : vector<2x128xf32> to vector<2x32xf32>
    %33 = vector.extract_strided_slice %30 {offsets = [0, 64], sizes = [2, 32], strides = [1, 1]} : vector<2x128xf32> to vector<2x32xf32>
    %34 = vector.extract_strided_slice %26 {offsets = [0, 96], sizes = [2, 32], strides = [1, 1]} : vector<2x128xf32> to vector<2x32xf32>
    %35 = arith.mulf %32, %19 : vector<2x32xf32>
    %36 = arith.mulf %31, %34 : vector<2x32xf32>
    %37 = arith.addf %35, %36 : vector<2x32xf32>
    %38 = math.tanh %37 : vector<2x32xf32>
    %39 = arith.mulf %33, %38 : vector<2x32xf32>
    %40 = arith.truncf %21 : vector<2x32xf32> to vector<2x32xbf16>
    %cst_16 = arith.constant dense<0.000000e+00> : vector<2x128xf32>
    %41 = tpu.matmul %40, %2, %cst_16 {dimension_numbers = #tpu.dot_dimension_numbers<[1], [0], [0], [1], [0, 0, 1, 1], [], []>} : vector<2x32xbf16>, vector<32x128xbf16>, vector<2x128xf32> -> vector<2x128xf32>
    %42 = vector.broadcast %4 : vector<1x128xf32> to vector<2x128xf32>
    %43 = arith.addf %41, %42 : vector<2x128xf32>
    %44 = math.tanh %43 : vector<2x128xf32>
    %cst_17 = arith.constant 5.000000e-01 : f32
    %45 = vector.broadcast %cst_17 : f32 to vector<2x128xf32>
    %46 = arith.mulf %44, %45 : vector<2x128xf32>
    %cst_18 = arith.constant 5.000000e-01 : f32
    %47 = vector.broadcast %cst_18 : f32 to vector<2x128xf32>
    %48 = arith.addf %46, %47 : vector<2x128xf32>
    %49 = vector.extract_strided_slice %48 {offsets = [0, 0], sizes = [2, 32], strides = [1, 1]} : vector<2x128xf32> to vector<2x32xf32>
    %50 = vector.extract_strided_slice %48 {offsets = [0, 64], sizes = [2, 32], strides = [1, 1]} : vector<2x128xf32> to vector<2x32xf32>
    %51 = vector.extract_strided_slice %44 {offsets = [0, 96], sizes = [2, 32], strides = [1, 1]} : vector<2x128xf32> to vector<2x32xf32>
    %52 = arith.mulf %49, %51 : vector<2x32xf32>
    %53 = math.tanh %52 : vector<2x32xf32>
    %54 = arith.mulf %50, %53 : vector<2x32xf32>
    %55 = vector.extract_strided_slice %9 {offsets = [4, 0], sizes = [2, 128], strides = [1, 1]} : vector<16x128xf32> to vector<2x128xf32>
    %56 = arith.truncf %39 : vector<2x32xf32> to vector<2x32xbf16>
    %cst_19 = arith.constant dense<0.000000e+00> : vector<2x128xf32>
    %57 = tpu.matmul %56, %0, %cst_19 {dimension_numbers = #tpu.dot_dimension_numbers<[1], [0], [0], [1], [0, 0, 1, 1], [], []>} : vector<2x32xbf16>, vector<32x128xbf16>, vector<2x128xf32> -> vector<2x128xf32>
    %58 = arith.addf %55, %57 : vector<2x128xf32>
    %59 = math.tanh %58 : vector<2x128xf32>
    %cst_20 = arith.constant 5.000000e-01 : f32
    %60 = vector.broadcast %cst_20 : f32 to vector<2x128xf32>
    %61 = arith.mulf %59, %60 : vector<2x128xf32>
    %cst_21 = arith.constant 5.000000e-01 : f32
    %62 = vector.broadcast %cst_21 : f32 to vector<2x128xf32>
    %63 = arith.addf %61, %62 : vector<2x128xf32>
    %64 = vector.extract_strided_slice %63 {offsets = [0, 0], sizes = [2, 32], strides = [1, 1]} : vector<2x128xf32> to vector<2x32xf32>
    %65 = vector.extract_strided_slice %63 {offsets = [0, 32], sizes = [2, 32], strides = [1, 1]} : vector<2x128xf32> to vector<2x32xf32>
    %66 = vector.extract_strided_slice %63 {offsets = [0, 64], sizes = [2, 32], strides = [1, 1]} : vector<2x128xf32> to vector<2x32xf32>
    %67 = vector.extract_strided_slice %59 {offsets = [0, 96], sizes = [2, 32], strides = [1, 1]} : vector<2x128xf32> to vector<2x32xf32>
    %68 = arith.mulf %65, %37 : vector<2x32xf32>
    %69 = arith.mulf %64, %67 : vector<2x32xf32>
    %70 = arith.addf %68, %69 : vector<2x32xf32>
    %71 = math.tanh %70 : vector<2x32xf32>
    %72 = arith.mulf %66, %71 : vector<2x32xf32>
    %73 = tpu.concatenate %39, %54 in 1 : vector<2x32xf32>, vector<2x32xf32> -> vector<2x64xf32>
    %74 = arith.truncf %73 : vector<2x64xf32> to vector<2x64xbf16>
    %cst_22 = arith.constant dense<0.000000e+00> : vector<2x128xf32>
    %75 = tpu.matmul %74, %1, %cst_22 {dimension_numbers = #tpu.dot_dimension_numbers<[1], [0], [0], [1], [0, 0, 1, 1], [], []>} : vector<2x64xbf16>, vector<64x128xbf16>, vector<2x128xf32> -> vector<2x128xf32>
    %76 = vector.broadcast %4 : vector<1x128xf32> to vector<2x128xf32>
    %77 = arith.addf %75, %76 : vector<2x128xf32>
    %78 = math.tanh %77 : vector<2x128xf32>
    %cst_23 = arith.constant 5.000000e-01 : f32
    %79 = vector.broadcast %cst_23 : f32 to vector<2x128xf32>
    %80 = arith.mulf %78, %79 : vector<2x128xf32>
    %cst_24 = arith.constant 5.000000e-01 : f32
    %81 = vector.broadcast %cst_24 : f32 to vector<2x128xf32>
    %82 = arith.addf %80, %81 : vector<2x128xf32>
    %83 = vector.extract_strided_slice %82 {offsets = [0, 0], sizes = [2, 32], strides = [1, 1]} : vector<2x128xf32> to vector<2x32xf32>
    %84 = vector.extract_strided_slice %82 {offsets = [0, 32], sizes = [2, 32], strides = [1, 1]} : vector<2x128xf32> to vector<2x32xf32>
    %85 = vector.extract_strided_slice %82 {offsets = [0, 64], sizes = [2, 32], strides = [1, 1]} : vector<2x128xf32> to vector<2x32xf32>
    %86 = vector.extract_strided_slice %78 {offsets = [0, 96], sizes = [2, 32], strides = [1, 1]} : vector<2x128xf32> to vector<2x32xf32>
    %87 = arith.mulf %84, %52 : vector<2x32xf32>
    %88 = arith.mulf %83, %86 : vector<2x32xf32>
    %89 = arith.addf %87, %88 : vector<2x32xf32>
    %90 = math.tanh %89 : vector<2x32xf32>
    %91 = arith.mulf %85, %90 : vector<2x32xf32>
    %92 = vector.extract_strided_slice %9 {offsets = [6, 0], sizes = [2, 128], strides = [1, 1]} : vector<16x128xf32> to vector<2x128xf32>
    %93 = arith.truncf %72 : vector<2x32xf32> to vector<2x32xbf16>
    %cst_25 = arith.constant dense<0.000000e+00> : vector<2x128xf32>
    %94 = tpu.matmul %93, %0, %cst_25 {dimension_numbers = #tpu.dot_dimension_numbers<[1], [0], [0], [1], [0, 0, 1, 1], [], []>} : vector<2x32xbf16>, vector<32x128xbf16>, vector<2x128xf32> -> vector<2x128xf32>
    %95 = arith.addf %92, %94 : vector<2x128xf32>
    %96 = math.tanh %95 : vector<2x128xf32>
    %cst_26 = arith.constant 5.000000e-01 : f32
    %97 = vector.broadcast %cst_26 : f32 to vector<2x128xf32>
    %98 = arith.mulf %96, %97 : vector<2x128xf32>
    %cst_27 = arith.constant 5.000000e-01 : f32
    %99 = vector.broadcast %cst_27 : f32 to vector<2x128xf32>
    %100 = arith.addf %98, %99 : vector<2x128xf32>
    %101 = vector.extract_strided_slice %100 {offsets = [0, 0], sizes = [2, 32], strides = [1, 1]} : vector<2x128xf32> to vector<2x32xf32>
    %102 = vector.extract_strided_slice %100 {offsets = [0, 32], sizes = [2, 32], strides = [1, 1]} : vector<2x128xf32> to vector<2x32xf32>
    %103 = vector.extract_strided_slice %100 {offsets = [0, 64], sizes = [2, 32], strides = [1, 1]} : vector<2x128xf32> to vector<2x32xf32>
    %104 = vector.extract_strided_slice %96 {offsets = [0, 96], sizes = [2, 32], strides = [1, 1]} : vector<2x128xf32> to vector<2x32xf32>
    %105 = arith.mulf %102, %70 : vector<2x32xf32>
    %106 = arith.mulf %101, %104 : vector<2x32xf32>
    %107 = arith.addf %105, %106 : vector<2x32xf32>
    %108 = math.tanh %107 : vector<2x32xf32>
    %109 = arith.mulf %103, %108 : vector<2x32xf32>
    %110 = tpu.concatenate %72, %91 in 1 : vector<2x32xf32>, vector<2x32xf32> -> vector<2x64xf32>
    %111 = arith.truncf %110 : vector<2x64xf32> to vector<2x64xbf16>
    %cst_28 = arith.constant dense<0.000000e+00> : vector<2x128xf32>
    %112 = tpu.matmul %111, %1, %cst_28 {dimension_numbers = #tpu.dot_dimension_numbers<[1], [0], [0], [1], [0, 0, 1, 1], [], []>} : vector<2x64xbf16>, vector<64x128xbf16>, vector<2x128xf32> -> vector<2x128xf32>
    %113 = vector.broadcast %4 : vector<1x128xf32> to vector<2x128xf32>
    %114 = arith.addf %112, %113 : vector<2x128xf32>
    %115 = math.tanh %114 : vector<2x128xf32>
    %cst_29 = arith.constant 5.000000e-01 : f32
    %116 = vector.broadcast %cst_29 : f32 to vector<2x128xf32>
    %117 = arith.mulf %115, %116 : vector<2x128xf32>
    %cst_30 = arith.constant 5.000000e-01 : f32
    %118 = vector.broadcast %cst_30 : f32 to vector<2x128xf32>
    %119 = arith.addf %117, %118 : vector<2x128xf32>
    %120 = vector.extract_strided_slice %119 {offsets = [0, 0], sizes = [2, 32], strides = [1, 1]} : vector<2x128xf32> to vector<2x32xf32>
    %121 = vector.extract_strided_slice %119 {offsets = [0, 32], sizes = [2, 32], strides = [1, 1]} : vector<2x128xf32> to vector<2x32xf32>
    %122 = vector.extract_strided_slice %119 {offsets = [0, 64], sizes = [2, 32], strides = [1, 1]} : vector<2x128xf32> to vector<2x32xf32>
    %123 = vector.extract_strided_slice %115 {offsets = [0, 96], sizes = [2, 32], strides = [1, 1]} : vector<2x128xf32> to vector<2x32xf32>
    %124 = arith.mulf %121, %89 : vector<2x32xf32>
    %125 = arith.mulf %120, %123 : vector<2x32xf32>
    %126 = arith.addf %124, %125 : vector<2x32xf32>
    %127 = math.tanh %126 : vector<2x32xf32>
    %128 = arith.mulf %122, %127 : vector<2x32xf32>
    %129 = vector.extract_strided_slice %9 {offsets = [8, 0], sizes = [2, 128], strides = [1, 1]} : vector<16x128xf32> to vector<2x128xf32>
    %130 = arith.truncf %109 : vector<2x32xf32> to vector<2x32xbf16>
    %cst_31 = arith.constant dense<0.000000e+00> : vector<2x128xf32>
    %131 = tpu.matmul %130, %0, %cst_31 {dimension_numbers = #tpu.dot_dimension_numbers<[1], [0], [0], [1], [0, 0, 1, 1], [], []>} : vector<2x32xbf16>, vector<32x128xbf16>, vector<2x128xf32> -> vector<2x128xf32>
    %132 = arith.addf %129, %131 : vector<2x128xf32>
    %133 = math.tanh %132 : vector<2x128xf32>
    %cst_32 = arith.constant 5.000000e-01 : f32
    %134 = vector.broadcast %cst_32 : f32 to vector<2x128xf32>
    %135 = arith.mulf %133, %134 : vector<2x128xf32>
    %cst_33 = arith.constant 5.000000e-01 : f32
    %136 = vector.broadcast %cst_33 : f32 to vector<2x128xf32>
    %137 = arith.addf %135, %136 : vector<2x128xf32>
    %138 = vector.extract_strided_slice %137 {offsets = [0, 0], sizes = [2, 32], strides = [1, 1]} : vector<2x128xf32> to vector<2x32xf32>
    %139 = vector.extract_strided_slice %137 {offsets = [0, 32], sizes = [2, 32], strides = [1, 1]} : vector<2x128xf32> to vector<2x32xf32>
    %140 = vector.extract_strided_slice %137 {offsets = [0, 64], sizes = [2, 32], strides = [1, 1]} : vector<2x128xf32> to vector<2x32xf32>
    %141 = vector.extract_strided_slice %133 {offsets = [0, 96], sizes = [2, 32], strides = [1, 1]} : vector<2x128xf32> to vector<2x32xf32>
    %142 = arith.mulf %139, %107 : vector<2x32xf32>
    %143 = arith.mulf %138, %141 : vector<2x32xf32>
    %144 = arith.addf %142, %143 : vector<2x32xf32>
    %145 = math.tanh %144 : vector<2x32xf32>
    %146 = arith.mulf %140, %145 : vector<2x32xf32>
    %147 = tpu.concatenate %109, %128 in 1 : vector<2x32xf32>, vector<2x32xf32> -> vector<2x64xf32>
    %148 = arith.truncf %147 : vector<2x64xf32> to vector<2x64xbf16>
    %cst_34 = arith.constant dense<0.000000e+00> : vector<2x128xf32>
    %149 = tpu.matmul %148, %1, %cst_34 {dimension_numbers = #tpu.dot_dimension_numbers<[1], [0], [0], [1], [0, 0, 1, 1], [], []>} : vector<2x64xbf16>, vector<64x128xbf16>, vector<2x128xf32> -> vector<2x128xf32>
    %150 = vector.broadcast %4 : vector<1x128xf32> to vector<2x128xf32>
    %151 = arith.addf %149, %150 : vector<2x128xf32>
    %152 = math.tanh %151 : vector<2x128xf32>
    %cst_35 = arith.constant 5.000000e-01 : f32
    %153 = vector.broadcast %cst_35 : f32 to vector<2x128xf32>
    %154 = arith.mulf %152, %153 : vector<2x128xf32>
    %cst_36 = arith.constant 5.000000e-01 : f32
    %155 = vector.broadcast %cst_36 : f32 to vector<2x128xf32>
    %156 = arith.addf %154, %155 : vector<2x128xf32>
    %157 = vector.extract_strided_slice %156 {offsets = [0, 0], sizes = [2, 32], strides = [1, 1]} : vector<2x128xf32> to vector<2x32xf32>
    %158 = vector.extract_strided_slice %156 {offsets = [0, 32], sizes = [2, 32], strides = [1, 1]} : vector<2x128xf32> to vector<2x32xf32>
    %159 = vector.extract_strided_slice %156 {offsets = [0, 64], sizes = [2, 32], strides = [1, 1]} : vector<2x128xf32> to vector<2x32xf32>
    %160 = vector.extract_strided_slice %152 {offsets = [0, 96], sizes = [2, 32], strides = [1, 1]} : vector<2x128xf32> to vector<2x32xf32>
    %161 = arith.mulf %158, %126 : vector<2x32xf32>
    %162 = arith.mulf %157, %160 : vector<2x32xf32>
    %163 = arith.addf %161, %162 : vector<2x32xf32>
    %164 = math.tanh %163 : vector<2x32xf32>
    %165 = arith.mulf %159, %164 : vector<2x32xf32>
    %166 = vector.extract_strided_slice %9 {offsets = [10, 0], sizes = [2, 128], strides = [1, 1]} : vector<16x128xf32> to vector<2x128xf32>
    %167 = arith.truncf %146 : vector<2x32xf32> to vector<2x32xbf16>
    %cst_37 = arith.constant dense<0.000000e+00> : vector<2x128xf32>
    %168 = tpu.matmul %167, %0, %cst_37 {dimension_numbers = #tpu.dot_dimension_numbers<[1], [0], [0], [1], [0, 0, 1, 1], [], []>} : vector<2x32xbf16>, vector<32x128xbf16>, vector<2x128xf32> -> vector<2x128xf32>
    %169 = arith.addf %166, %168 : vector<2x128xf32>
    %170 = math.tanh %169 : vector<2x128xf32>
    %cst_38 = arith.constant 5.000000e-01 : f32
    %171 = vector.broadcast %cst_38 : f32 to vector<2x128xf32>
    %172 = arith.mulf %170, %171 : vector<2x128xf32>
    %cst_39 = arith.constant 5.000000e-01 : f32
    %173 = vector.broadcast %cst_39 : f32 to vector<2x128xf32>
    %174 = arith.addf %172, %173 : vector<2x128xf32>
    %175 = vector.extract_strided_slice %174 {offsets = [0, 0], sizes = [2, 32], strides = [1, 1]} : vector<2x128xf32> to vector<2x32xf32>
    %176 = vector.extract_strided_slice %174 {offsets = [0, 32], sizes = [2, 32], strides = [1, 1]} : vector<2x128xf32> to vector<2x32xf32>
    %177 = vector.extract_strided_slice %174 {offsets = [0, 64], sizes = [2, 32], strides = [1, 1]} : vector<2x128xf32> to vector<2x32xf32>
    %178 = vector.extract_strided_slice %170 {offsets = [0, 96], sizes = [2, 32], strides = [1, 1]} : vector<2x128xf32> to vector<2x32xf32>
    %179 = arith.mulf %176, %144 : vector<2x32xf32>
    %180 = arith.mulf %175, %178 : vector<2x32xf32>
    %181 = arith.addf %179, %180 : vector<2x32xf32>
    %182 = math.tanh %181 : vector<2x32xf32>
    %183 = arith.mulf %177, %182 : vector<2x32xf32>
    %184 = tpu.concatenate %146, %165 in 1 : vector<2x32xf32>, vector<2x32xf32> -> vector<2x64xf32>
    %185 = arith.truncf %184 : vector<2x64xf32> to vector<2x64xbf16>
    %cst_40 = arith.constant dense<0.000000e+00> : vector<2x128xf32>
    %186 = tpu.matmul %185, %1, %cst_40 {dimension_numbers = #tpu.dot_dimension_numbers<[1], [0], [0], [1], [0, 0, 1, 1], [], []>} : vector<2x64xbf16>, vector<64x128xbf16>, vector<2x128xf32> -> vector<2x128xf32>
    %187 = vector.broadcast %4 : vector<1x128xf32> to vector<2x128xf32>
    %188 = arith.addf %186, %187 : vector<2x128xf32>
    %189 = math.tanh %188 : vector<2x128xf32>
    %cst_41 = arith.constant 5.000000e-01 : f32
    %190 = vector.broadcast %cst_41 : f32 to vector<2x128xf32>
    %191 = arith.mulf %189, %190 : vector<2x128xf32>
    %cst_42 = arith.constant 5.000000e-01 : f32
    %192 = vector.broadcast %cst_42 : f32 to vector<2x128xf32>
    %193 = arith.addf %191, %192 : vector<2x128xf32>
    %194 = vector.extract_strided_slice %193 {offsets = [0, 0], sizes = [2, 32], strides = [1, 1]} : vector<2x128xf32> to vector<2x32xf32>
    %195 = vector.extract_strided_slice %193 {offsets = [0, 32], sizes = [2, 32], strides = [1, 1]} : vector<2x128xf32> to vector<2x32xf32>
    %196 = vector.extract_strided_slice %193 {offsets = [0, 64], sizes = [2, 32], strides = [1, 1]} : vector<2x128xf32> to vector<2x32xf32>
    %197 = vector.extract_strided_slice %189 {offsets = [0, 96], sizes = [2, 32], strides = [1, 1]} : vector<2x128xf32> to vector<2x32xf32>
    %198 = arith.mulf %195, %163 : vector<2x32xf32>
    %199 = arith.mulf %194, %197 : vector<2x32xf32>
    %200 = arith.addf %198, %199 : vector<2x32xf32>
    %201 = math.tanh %200 : vector<2x32xf32>
    %202 = arith.mulf %196, %201 : vector<2x32xf32>
    %203 = vector.extract_strided_slice %9 {offsets = [12, 0], sizes = [2, 128], strides = [1, 1]} : vector<16x128xf32> to vector<2x128xf32>
    %204 = arith.truncf %183 : vector<2x32xf32> to vector<2x32xbf16>
    %cst_43 = arith.constant dense<0.000000e+00> : vector<2x128xf32>
    %205 = tpu.matmul %204, %0, %cst_43 {dimension_numbers = #tpu.dot_dimension_numbers<[1], [0], [0], [1], [0, 0, 1, 1], [], []>} : vector<2x32xbf16>, vector<32x128xbf16>, vector<2x128xf32> -> vector<2x128xf32>
    %206 = arith.addf %203, %205 : vector<2x128xf32>
    %207 = math.tanh %206 : vector<2x128xf32>
    %cst_44 = arith.constant 5.000000e-01 : f32
    %208 = vector.broadcast %cst_44 : f32 to vector<2x128xf32>
    %209 = arith.mulf %207, %208 : vector<2x128xf32>
    %cst_45 = arith.constant 5.000000e-01 : f32
    %210 = vector.broadcast %cst_45 : f32 to vector<2x128xf32>
    %211 = arith.addf %209, %210 : vector<2x128xf32>
    %212 = vector.extract_strided_slice %211 {offsets = [0, 0], sizes = [2, 32], strides = [1, 1]} : vector<2x128xf32> to vector<2x32xf32>
    %213 = vector.extract_strided_slice %211 {offsets = [0, 32], sizes = [2, 32], strides = [1, 1]} : vector<2x128xf32> to vector<2x32xf32>
    %214 = vector.extract_strided_slice %211 {offsets = [0, 64], sizes = [2, 32], strides = [1, 1]} : vector<2x128xf32> to vector<2x32xf32>
    %215 = vector.extract_strided_slice %207 {offsets = [0, 96], sizes = [2, 32], strides = [1, 1]} : vector<2x128xf32> to vector<2x32xf32>
    %216 = arith.mulf %213, %181 : vector<2x32xf32>
    %217 = arith.mulf %212, %215 : vector<2x32xf32>
    %218 = arith.addf %216, %217 : vector<2x32xf32>
    %219 = math.tanh %218 : vector<2x32xf32>
    %220 = arith.mulf %214, %219 : vector<2x32xf32>
    %221 = tpu.concatenate %183, %202 in 1 : vector<2x32xf32>, vector<2x32xf32> -> vector<2x64xf32>
    %222 = arith.truncf %221 : vector<2x64xf32> to vector<2x64xbf16>
    %cst_46 = arith.constant dense<0.000000e+00> : vector<2x128xf32>
    %223 = tpu.matmul %222, %1, %cst_46 {dimension_numbers = #tpu.dot_dimension_numbers<[1], [0], [0], [1], [0, 0, 1, 1], [], []>} : vector<2x64xbf16>, vector<64x128xbf16>, vector<2x128xf32> -> vector<2x128xf32>
    %224 = vector.broadcast %4 : vector<1x128xf32> to vector<2x128xf32>
    %225 = arith.addf %223, %224 : vector<2x128xf32>
    %226 = math.tanh %225 : vector<2x128xf32>
    %cst_47 = arith.constant 5.000000e-01 : f32
    %227 = vector.broadcast %cst_47 : f32 to vector<2x128xf32>
    %228 = arith.mulf %226, %227 : vector<2x128xf32>
    %cst_48 = arith.constant 5.000000e-01 : f32
    %229 = vector.broadcast %cst_48 : f32 to vector<2x128xf32>
    %230 = arith.addf %228, %229 : vector<2x128xf32>
    %231 = vector.extract_strided_slice %230 {offsets = [0, 0], sizes = [2, 32], strides = [1, 1]} : vector<2x128xf32> to vector<2x32xf32>
    %232 = vector.extract_strided_slice %230 {offsets = [0, 32], sizes = [2, 32], strides = [1, 1]} : vector<2x128xf32> to vector<2x32xf32>
    %233 = vector.extract_strided_slice %230 {offsets = [0, 64], sizes = [2, 32], strides = [1, 1]} : vector<2x128xf32> to vector<2x32xf32>
    %234 = vector.extract_strided_slice %226 {offsets = [0, 96], sizes = [2, 32], strides = [1, 1]} : vector<2x128xf32> to vector<2x32xf32>
    %235 = arith.mulf %232, %200 : vector<2x32xf32>
    %236 = arith.mulf %231, %234 : vector<2x32xf32>
    %237 = arith.addf %235, %236 : vector<2x32xf32>
    %238 = math.tanh %237 : vector<2x32xf32>
    %239 = arith.mulf %233, %238 : vector<2x32xf32>
    %240 = vector.extract_strided_slice %9 {offsets = [14, 0], sizes = [2, 128], strides = [1, 1]} : vector<16x128xf32> to vector<2x128xf32>
    %241 = arith.truncf %220 : vector<2x32xf32> to vector<2x32xbf16>
    %cst_49 = arith.constant dense<0.000000e+00> : vector<2x128xf32>
    %242 = tpu.matmul %241, %0, %cst_49 {dimension_numbers = #tpu.dot_dimension_numbers<[1], [0], [0], [1], [0, 0, 1, 1], [], []>} : vector<2x32xbf16>, vector<32x128xbf16>, vector<2x128xf32> -> vector<2x128xf32>
    %243 = arith.addf %240, %242 : vector<2x128xf32>
    %244 = math.tanh %243 : vector<2x128xf32>
    %cst_50 = arith.constant 5.000000e-01 : f32
    %245 = vector.broadcast %cst_50 : f32 to vector<2x128xf32>
    %246 = arith.mulf %244, %245 : vector<2x128xf32>
    %cst_51 = arith.constant 5.000000e-01 : f32
    %247 = vector.broadcast %cst_51 : f32 to vector<2x128xf32>
    %248 = arith.addf %246, %247 : vector<2x128xf32>
    %249 = vector.extract_strided_slice %248 {offsets = [0, 0], sizes = [2, 32], strides = [1, 1]} : vector<2x128xf32> to vector<2x32xf32>
    %250 = vector.extract_strided_slice %248 {offsets = [0, 32], sizes = [2, 32], strides = [1, 1]} : vector<2x128xf32> to vector<2x32xf32>
    %251 = vector.extract_strided_slice %248 {offsets = [0, 64], sizes = [2, 32], strides = [1, 1]} : vector<2x128xf32> to vector<2x32xf32>
    %252 = vector.extract_strided_slice %244 {offsets = [0, 96], sizes = [2, 32], strides = [1, 1]} : vector<2x128xf32> to vector<2x32xf32>
    %253 = arith.mulf %250, %218 : vector<2x32xf32>
    %254 = arith.mulf %249, %252 : vector<2x32xf32>
    %255 = arith.addf %253, %254 : vector<2x32xf32>
    %256 = math.tanh %255 : vector<2x32xf32>
    %257 = arith.mulf %251, %256 : vector<2x32xf32>
    %258 = tpu.concatenate %220, %239 in 1 : vector<2x32xf32>, vector<2x32xf32> -> vector<2x64xf32>
    %259 = arith.truncf %258 : vector<2x64xf32> to vector<2x64xbf16>
    %cst_52 = arith.constant dense<0.000000e+00> : vector<2x128xf32>
    %260 = tpu.matmul %259, %1, %cst_52 {dimension_numbers = #tpu.dot_dimension_numbers<[1], [0], [0], [1], [0, 0, 1, 1], [], []>} : vector<2x64xbf16>, vector<64x128xbf16>, vector<2x128xf32> -> vector<2x128xf32>
    %261 = vector.broadcast %4 : vector<1x128xf32> to vector<2x128xf32>
    %262 = arith.addf %260, %261 : vector<2x128xf32>
    %263 = math.tanh %262 : vector<2x128xf32>
    %cst_53 = arith.constant 5.000000e-01 : f32
    %264 = vector.broadcast %cst_53 : f32 to vector<2x128xf32>
    %265 = arith.mulf %263, %264 : vector<2x128xf32>
    %cst_54 = arith.constant 5.000000e-01 : f32
    %266 = vector.broadcast %cst_54 : f32 to vector<2x128xf32>
    %267 = arith.addf %265, %266 : vector<2x128xf32>
    %268 = vector.extract_strided_slice %267 {offsets = [0, 0], sizes = [2, 32], strides = [1, 1]} : vector<2x128xf32> to vector<2x32xf32>
    %269 = vector.extract_strided_slice %267 {offsets = [0, 32], sizes = [2, 32], strides = [1, 1]} : vector<2x128xf32> to vector<2x32xf32>
    %270 = vector.extract_strided_slice %267 {offsets = [0, 64], sizes = [2, 32], strides = [1, 1]} : vector<2x128xf32> to vector<2x32xf32>
    %271 = vector.extract_strided_slice %263 {offsets = [0, 96], sizes = [2, 32], strides = [1, 1]} : vector<2x128xf32> to vector<2x32xf32>
    %272 = arith.mulf %269, %237 : vector<2x32xf32>
    %273 = arith.mulf %268, %271 : vector<2x32xf32>
    %274 = arith.addf %272, %273 : vector<2x32xf32>
    %275 = math.tanh %274 : vector<2x32xf32>
    %276 = arith.mulf %270, %275 : vector<2x32xf32>
    %277 = tpu.concatenate %257, %276 in 1 : vector<2x32xf32>, vector<2x32xf32> -> vector<2x64xf32>
    %278 = arith.truncf %277 : vector<2x64xf32> to vector<2x64xbf16>
    %cst_55 = arith.constant dense<0.000000e+00> : vector<2x128xf32>
    %279 = tpu.matmul %278, %1, %cst_55 {dimension_numbers = #tpu.dot_dimension_numbers<[1], [0], [0], [1], [0, 0, 1, 1], [], []>} : vector<2x64xbf16>, vector<64x128xbf16>, vector<2x128xf32> -> vector<2x128xf32>
    %280 = vector.broadcast %4 : vector<1x128xf32> to vector<2x128xf32>
    %281 = arith.addf %279, %280 : vector<2x128xf32>
    %282 = math.tanh %281 : vector<2x128xf32>
    %cst_56 = arith.constant 5.000000e-01 : f32
    %283 = vector.broadcast %cst_56 : f32 to vector<2x128xf32>
    %284 = arith.mulf %282, %283 : vector<2x128xf32>
    %cst_57 = arith.constant 5.000000e-01 : f32
    %285 = vector.broadcast %cst_57 : f32 to vector<2x128xf32>
    %286 = arith.addf %284, %285 : vector<2x128xf32>
    %287 = vector.extract_strided_slice %286 {offsets = [0, 0], sizes = [2, 32], strides = [1, 1]} : vector<2x128xf32> to vector<2x32xf32>
    %288 = vector.extract_strided_slice %286 {offsets = [0, 32], sizes = [2, 32], strides = [1, 1]} : vector<2x128xf32> to vector<2x32xf32>
    %289 = vector.extract_strided_slice %286 {offsets = [0, 64], sizes = [2, 32], strides = [1, 1]} : vector<2x128xf32> to vector<2x32xf32>
    %290 = vector.extract_strided_slice %282 {offsets = [0, 96], sizes = [2, 32], strides = [1, 1]} : vector<2x128xf32> to vector<2x32xf32>
    %291 = arith.mulf %288, %274 : vector<2x32xf32>
    %292 = arith.mulf %287, %290 : vector<2x32xf32>
    %293 = arith.addf %291, %292 : vector<2x32xf32>
    %294 = math.tanh %293 : vector<2x32xf32>
    %295 = arith.mulf %289, %294 : vector<2x32xf32>
    %296 = arith.truncf %295 : vector<2x32xf32> to vector<2x32xbf16>
    %c0_58 = arith.constant 0 : index
    %c0_59 = arith.constant 0 : index
    %297 = vector.load %arg6[%c0_58, %c0_59] : memref<32x128xbf16, #tpu.memory_space<vmem>>, vector<32x128xbf16>
    %cst_60 = arith.constant dense<0.000000e+00> : vector<2x128xf32>
    %298 = tpu.matmul %296, %297, %cst_60 {dimension_numbers = #tpu.dot_dimension_numbers<[1], [0], [0], [1], [0, 0, 1, 1], [], []>} : vector<2x32xbf16>, vector<32x128xbf16>, vector<2x128xf32> -> vector<2x128xf32>
    %c0_61 = arith.constant 0 : index
    %c0_62 = arith.constant 0 : index
    %299 = vector.load %arg7[%c0_61, %c0_62] : memref<1x128xf32, #tpu.memory_space<vmem>>, vector<1x128xf32>
    %300 = vector.broadcast %299 : vector<1x128xf32> to vector<2x128xf32>
    %301 = arith.addf %298, %300 : vector<2x128xf32>
    %c0_63 = arith.constant 0 : index
    %c0_64 = arith.constant 0 : index
    %302 = vector.load %arg8[%c0_63, %c0_64] : memref<2x128xf32, #tpu.memory_space<vmem>>, vector<2x128xf32>
    tpu.vector_store %arg8[%c0_63, %c0_64], %301 {strides = array<i32>} : memref<2x128xf32, #tpu.memory_space<vmem>>, vector<2x128xf32>,
    return
  }
}

</mosaic_0001>

<llo_original>
// kernel: lstm_model_forward.1
$region0: #{lstm_model_forward.1}
  #allocation0 [shape = 'u32[]', space=smem, size = 0x4, offset = 0x4, fixed_abs, tag = 'smem constant byte address 0x4 - core index']
  #allocation1 [shape = 'u32[144,128]{1,0:T(1,128)}', space=vmem, size = 0x12000, scoped, tag = 'internal scratch']
  %s0 = inlined_call_operand.vmem [shape: bf16[16,16], index: 0, kind: input, shape index: {}]
  %s1 = inlined_call_operand.vmem [shape: bf16[16,128], index: 1, kind: input, shape index: {}]
  %s2 = inlined_call_operand.vmem [shape: bf16[32,128], index: 2, kind: input, shape index: {}]
  %s3 = inlined_call_operand.vmem [shape: f32[1,128], index: 3, kind: input, shape index: {}]
  %s4 = inlined_call_operand.vmem [shape: bf16[64,128], index: 4, kind: input, shape index: {}]
  %s5 = inlined_call_operand.vmem [shape: f32[1,128], index: 5, kind: input, shape index: {}]
  %s6 = inlined_call_operand.hbm [shape: bf16[32,128], index: 6, kind: input, shape index: {}]
  %s7 = inlined_call_operand.vmem [shape: f32[1,128], index: 7, kind: input, shape index: {}]
  %s8 = inlined_call_operand.hbm [shape: f32[2,128], index: 8, kind: output, shape index: {}]
  %s9 = sld [smem:[#allocation0]]
  $region46: #{lstm_model_forward.1} parent=0
    _
  %s11 = ssub.s32 1, %s9
  %s12 = scalar_select 0, %s11, %s9
  $region1: #{lstm_model_forward.1} parent=0
    #allocation2 [shape = 'u8[8192]{0}', space=vmem, size = 0x2000, scoped, tag = 'input window, operand 6, single buffered']
    #allocation3 [shape = 's32[1]{0}', space=sflag, size = 0x4, scoped, tag = 'scoped memory for lstm_model_forward.1']
    #allocation4 [shape = 's32[1]{0}', space=sflag, size = 0x4, scoped, tag = 'scoped memory for lstm_model_forward.1']
    #allocation5 [shape = 'u8[1024]{0}', space=vmem, size = 0x400, scoped, tag = 'output window, operand 0, single buffered']
    %13 = vsyncpa [#allocation3], 0
    %14 = vsyncpa [#allocation4], 0
    // Predicated region
    $region2: #{lstm_model_forward.1} parent=1 // pred_check
      _
    $region3: #{lstm_model_forward.1} parent=1 // pred_check_branch
      %16 = sbr.rel (0) target = $region5
    $region4: #{lstm_model_forward.1} parent=1 // pred_region
      _
    $region5: #{lstm_model_forward.1} parent=1 // pred_fallthru
      _
    // Predicated region
    $region6: #{lstm_model_forward.1} parent=1 // pred_check
      _
    $region7: #{lstm_model_forward.1} parent=1 // pred_check_branch
      %18 = sbr.rel (0) target = $region9
    $region8: #{lstm_model_forward.1} parent=1 // pred_region
      _
    $region9: #{lstm_model_forward.1} parent=1 // pred_fallthru
      _
    // Predicated region
    $region10: #{lstm_model_forward.1} parent=1 // pred_check
      _
    $region11: #{lstm_model_forward.1} parent=1 // pred_check_branch
      %20 = sbr.rel (0) target = $region13
    $region12: #{lstm_model_forward.1} parent=1 // pred_region
      _
    $region13: #{lstm_model_forward.1} parent=1 // pred_fallthru
      _
    // Predicated region
    $region14: #{lstm_model_forward.1} parent=1 // pred_check
      _
    $region15: #{lstm_model_forward.1} parent=1 // pred_check_branch
      %22 = sbr.rel (0) target = $region17
    $region16: #{lstm_model_forward.1} parent=1 // pred_region
      _
    $region17: #{lstm_model_forward.1} parent=1 // pred_fallthru
      _
    // Predicated region
    $region18: #{lstm_model_forward.1} parent=1 // pred_check
      _
    $region19: #{lstm_model_forward.1} parent=1 // pred_check_branch
      %24 = sbr.rel (0) target = $region21
    $region20: #{lstm_model_forward.1} parent=1 // pred_region
      _
    $region21: #{lstm_model_forward.1} parent=1 // pred_fallthru
      _
    // Predicated region
    $region22: #{lstm_model_forward.1} parent=1 // pred_check
      _
    $region23: #{lstm_model_forward.1} parent=1 // pred_check_branch
      %26 = sbr.rel (0) target = $region25
    $region24: #{lstm_model_forward.1} parent=1 // pred_region
      _
    $region25: #{lstm_model_forward.1} parent=1 // pred_fallthru
      _
    // Predicated region
    $region26: #{lstm_model_forward.1} parent=1 // pred_check
      _
    $region27: #{lstm_model_forward.1} parent=1 // pred_check_branch
      %28 = sbr.rel (0) target = $region29
    $region28: #{lstm_model_forward.1} parent=1 // pred_region
      %s30 = ssub.s32 256, 256
      %31 = vsyncadd [#allocation3], %s30
      %s32 = sshll.u32 [#allocation2], 4
      %s33 = int_to_ptr.vmem [resolvable:$true] %s32
      %38 = dma.hbm_to_vmem [thread:$0]  %s6, 256, %s33, [#allocation3], 64, 64, 4
    $region29: #{lstm_model_forward.1} parent=1 // pred_fallthru
      _
    // Predicated region
    $region30: #{lstm_model_forward.1} parent=1 // pred_check
      _
    $region31: #{lstm_model_forward.1} parent=1 // pred_check_branch
      %40 = sbr.rel (0) target = $region33
    $region32: #{lstm_model_forward.1} parent=1 // pred_region
      _
    $region33: #{lstm_model_forward.1} parent=1 // pred_fallthru
      _
    // Predicated region
    $region34: #{lstm_model_forward.1} parent=1 // pred_check
      _
    $region35: #{lstm_model_forward.1} parent=1 // pred_check_branch
      %42 = sbr.rel (0) target = $region37
    $region36: #{lstm_model_forward.1} parent=1 // pred_region
      %43 = dma.done [#allocation3], 256
    $region37: #{lstm_model_forward.1} parent=1 // pred_fallthru
      _
    %v45 = vld [vmem:[%s2] sm:$0xf]
    %v46 = vld [vmem:[%s2 + $0x4] sm:$0xf]
    %v47 = vld [vmem:[%s2 + $0x8] sm:$0xf]
    %v48 = vld [vmem:[%s2 + $0xc] sm:$0xf]
    %v49 = vld [vmem:[%s4] sm:$0xf]
    %v50 = vld [vmem:[%s4 + $0x4] sm:$0xf]
    %v51 = vld [vmem:[%s4 + $0x8] sm:$0xf]
    %v52 = vld [vmem:[%s4 + $0xc] sm:$0xf]
    %v53 = vld [vmem:[%s4 + $0x10] sm:$0xf]
    %v54 = vld [vmem:[%s4 + $0x14] sm:$0xf]
    %v55 = vld [vmem:[%s4 + $0x18] sm:$0xf]
    %v56 = vld [vmem:[%s4 + $0x1c] sm:$0xf]
    %v57 = vld [vmem:[%s3] sm:$0x1]
    %v58 = vld [vmem:[%s5] sm:$0x1]
    %v59 = vld [vmem:[%s0] sm:$0xf]
    %v60 = vld [vmem:[%s0 + $0x4] sm:$0xf]
    %v61 = vld [vmem:[%s1] sm:$0xf]
    %v62 = vld [vmem:[%s1 + $0x4] sm:$0xf]
    %v64 = vlaneseq
    %v65 = vshrl.u32 %v64, 7
    %v66 = vsub.s32 0, %v65
    %v67 = vrot.slane %v57, %v66
    %v71 = vunpack.c.l.b16 %v59
    %v72 = vunpack.c.l.b16 %v60
    %v73 = vpack.c.b16 %v72, %v71
    %v76 = vunpack.c.l.b16 %v61
    %v77 = vunpack.c.l.b16 %v62
    %v78 = vpack.c.b16 %v77, %v76
    %vm80 = vcmask 130048
    %v82 = vsel %vm80, %v73, 0
    %84 = vmatprep.subr.bf16.mxu0 0
    %85 = vmatpush1.bf16.msra.mxu0 %v78
    %86 = vmatprep.subr.bf16.mxu0 0
    %87 = vmatpush1.bf16.msra.mxu0 0
    %88 = vmatprep.subr.bf16.mxu0 0
    %89 = vmatpush1.bf16.msra.mxu0 0
    %90 = vmatprep.subr.bf16.mxu0 0
    %91 = vmatpush1.bf16.msra.mxu0 0
    %92 = vmatprep.subr.bf16.mxu0 0
    %93 = vmatpush1.bf16.msra.mxu0 0
    %94 = vmatprep.subr.bf16.mxu0 0
    %95 = vmatpush1.bf16.msra.mxu0 0
    %96 = vmatprep.subr.bf16.mxu0 0
    %97 = vmatpush1.bf16.msra.mxu0 0
    %98 = vmatprep.subr.bf16.mxu0 0
    %99 = vmatpush1.bf16.msra.mxu0 0
    %100 = vmatprep.subr.bf16.mxu0 0
    %101 = vmatpush1.bf16.msra.mxu0 0
    %102 = vmatprep.subr.bf16.mxu0 0
    %103 = vmatpush1.bf16.msra.mxu0 0
    %104 = vmatprep.subr.bf16.mxu0 0
    %105 = vmatpush1.bf16.msra.mxu0 0
    %106 = vmatprep.subr.bf16.mxu0 0
    %107 = vmatpush1.bf16.msra.mxu0 0
    %108 = vmatprep.subr.bf16.mxu0 0
    %109 = vmatpush1.bf16.msra.mxu0 0
    %110 = vmatprep.subr.bf16.mxu0 0
    %111 = vmatpush1.bf16.msra.mxu0 0
    %112 = vmatprep.subr.bf16.mxu0 0
    %113 = vmatpush1.bf16.msra.mxu0 0
    %114 = vmatprep.subr.bf16.mxu0 0
    %115 = vmatpush1.bf16.msra.mxu0 0
    %116 = vmatprep.mubr.bf16.mxu0 0
    %117 = vmatmul.mubr.bf16.gmra.mrb[0].mxu0 %v82
    %v118 = vpop.f32.mrb[0].mxu0
    %v119 = vadd.f32 %v67, %v118
    %v120 = vpop.f32.mrb[0].mxu0
    %v121 = vpop.f32.mrb[0].mxu0
    %v122 = vadd.f32 %v67, %v121
    %v123 = vpop.f32.mrb[0].mxu0
    %124 = vdwg.mxu0
    %v125 = vtanh.pop %v119
    %v126 = vmul.f32 %v125, 0.5
    %v127 = vadd.f32 %v126, 0.5
    %129 = vrot.lane.b32.xlu0 %v125, 32
    %v130 = vpop.permute.xlu0 %129
    %v132 = vmul.f32 %v127, %v130
    %v133 = vtanh.pop %v132
    %135 = vrot.lane.b32.xlu0 %v133, 64
    %v136 = vpop.permute.xlu0 %135
    %v138 = vmul.f32 %v127, %v136
    %v139 = vpack.c.bf16 %v138, %v138
    %141 = vrot.lane.b32.xlu0 %v139, 64
    %v142 = vpop.permute.xlu0 %141
    %v147 = vunpack.c.l.b16 %v45
    %v148 = vunpack.c.l.b16 %v46
    %v149 = vunpack.c.l.b16 %v47
    %v150 = vunpack.c.l.b16 %v48
    %v151 = vpack.c.b16 %v148, %v147
    %v152 = vpack.c.b16 %v150, %v149
    %vm155 = vcmask 261120
    %v157 = vsel %vm155, %v142, 0
    %159 = vmatprep.subr.bf16.mxu0 0
    %160 = vmatpush1.bf16.msra.mxu0 %v151
    %161 = vmatprep.subr.bf16.mxu0 0
    %162 = vmatpush1.bf16.msra.mxu0 %v152
    %163 = vmatprep.subr.bf16.mxu0 0
    %164 = vmatpush1.bf16.msra.mxu0 0
    %165 = vmatprep.subr.bf16.mxu0 0
    %166 = vmatpush1.bf16.msra.mxu0 0
    %167 = vmatprep.subr.bf16.mxu0 0
    %168 = vmatpush1.bf16.msra.mxu0 0
    %169 = vmatprep.subr.bf16.mxu0 0
    %170 = vmatpush1.bf16.msra.mxu0 0
    %171 = vmatprep.subr.bf16.mxu0 0
    %172 = vmatpush1.bf16.msra.mxu0 0
    %173 = vmatprep.subr.bf16.mxu0 0
    %174 = vmatpush1.bf16.msra.mxu0 0
    %175 = vmatprep.subr.bf16.mxu0 0
    %176 = vmatpush1.bf16.msra.mxu0 0
    %177 = vmatprep.subr.bf16.mxu0 0
    %178 = vmatpush1.bf16.msra.mxu0 0
    %179 = vmatprep.subr.bf16.mxu0 0
    %180 = vmatpush1.bf16.msra.mxu0 0
    %181 = vmatprep.subr.bf16.mxu0 0
    %182 = vmatpush1.bf16.msra.mxu0 0
    %183 = vmatprep.subr.bf16.mxu0 0
    %184 = vmatpush1.bf16.msra.mxu0 0
    %185 = vmatprep.subr.bf16.mxu0 0
    %186 = vmatpush1.bf16.msra.mxu0 0
    %187 = vmatprep.subr.bf16.mxu0 0
    %188 = vmatpush1.bf16.msra.mxu0 0
    %189 = vmatprep.subr.bf16.mxu0 0
    %190 = vmatpush1.bf16.msra.mxu0 0
    %191 = vmatprep.mubr.bf16.mxu0 0
    %192 = vmatmul.mubr.bf16.gmra.mrb[0].mxu0 %v157
    %v193 = vpop.f32.mrb[0].mxu0
    %v194 = vadd.f32 0.0, %v193
    %v195 = vpop.f32.mrb[0].mxu0
    %v196 = vpop.f32.mrb[0].mxu0
    %v197 = vpop.f32.mrb[0].mxu0
    %198 = vdwg.mxu0
    %v200 = vrot.slane %v194, 6
    %v202 = vadd.f32 %v119, %v200
    %v203 = vtanh.pop %v202
    %v204 = vmul.f32 %v203, 0.5
    %v205 = vadd.f32 %v204, 0.5
    %v207 = vrot.slane %v132, 6
    %208 = vrot.lane.b32.xlu0 %v207, 32
    %v209 = vpop.permute.xlu0 %208
    %v211 = vmul.f32 %v205, %v209
    %213 = vrot.lane.b32.xlu0 %v203, 32
    %v214 = vpop.permute.xlu0 %213
    %v216 = vmul.f32 %v205, %v214
    %218 = vrot.lane.b32.xlu0 %v216, 32
    %v219 = vpop.permute.xlu0 %218
    %v221 = vadd.f32 %v211, %v219
    %v222 = vtanh.pop %v221
    %224 = vrot.lane.b32.xlu0 %v222, 32
    %v225 = vpop.permute.xlu0 %224
    %v227 = vmul.f32 %v205, %v225
    %v229 = vlaneseq
    %v230 = vshrl.u32 %v229, 7
    %v231 = vsub.s32 0, %v230
    %v232 = vrot.slane %v58, %v231
    %v238 = vunpack.c.l.b16 %v49
    %v239 = vunpack.c.l.b16 %v50
    %v240 = vunpack.c.l.b16 %v51
    %v241 = vunpack.c.l.b16 %v52
    %v242 = vpack.c.b16 %v239, %v238
    %v243 = vpack.c.b16 %v241, %v240
    %246 = vmatprep.subr.bf16.mxu0 0
    %247 = vmatpush1.bf16.msra.mxu0 %v242
    %248 = vmatprep.subr.bf16.mxu0 0
    %249 = vmatpush1.bf16.msra.mxu0 %v243
    %250 = vmatprep.subr.bf16.mxu0 0
    %251 = vmatpush1.bf16.msra.mxu0 0
    %252 = vmatprep.subr.bf16.mxu0 0
    %253 = vmatpush1.bf16.msra.mxu0 0
    %254 = vmatprep.subr.bf16.mxu0 0
    %255 = vmatpush1.bf16.msra.mxu0 0
    %256 = vmatprep.subr.bf16.mxu0 0
    %257 = vmatpush1.bf16.msra.mxu0 0
    %258 = vmatprep.subr.bf16.mxu0 0
    %259 = vmatpush1.bf16.msra.mxu0 0
    %260 = vmatprep.subr.bf16.mxu0 0
    %261 = vmatpush1.bf16.msra.mxu0 0
    %262 = vmatprep.subr.bf16.mxu0 0
    %263 = vmatpush1.bf16.msra.mxu0 0
    %264 = vmatprep.subr.bf16.mxu0 0
    %265 = vmatpush1.bf16.msra.mxu0 0
    %266 = vmatprep.subr.bf16.mxu0 0
    %267 = vmatpush1.bf16.msra.mxu0 0
    %268 = vmatprep.subr.bf16.mxu0 0
    %269 = vmatpush1.bf16.msra.mxu0 0
    %270 = vmatprep.subr.bf16.mxu0 0
    %271 = vmatpush1.bf16.msra.mxu0 0
    %272 = vmatprep.subr.bf16.mxu0 0
    %273 = vmatpush1.bf16.msra.mxu0 0
    %274 = vmatprep.subr.bf16.mxu0 0
    %275 = vmatpush1.bf16.msra.mxu0 0
    %276 = vmatprep.subr.bf16.mxu0 0
    %277 = vmatpush1.bf16.msra.mxu0 0
    %278 = vmatprep.mubr.bf16.mxu0 0
    %279 = vmatmul.mubr.bf16.gmra.mrb[0].mxu0 %v157
    %v280 = vpop.f32.mrb[0].mxu0
    %v281 = vadd.f32 %v232, %v280
    %v282 = vpop.f32.mrb[0].mxu0
    %v283 = vpop.f32.mrb[0].mxu0
    %v284 = vpop.f32.mrb[0].mxu0
    %285 = vdwg.mxu0
    %v286 = vtanh.pop %v281
    %v287 = vmul.f32 %v286, 0.5
    %v288 = vadd.f32 %v287, 0.5
    %290 = vrot.lane.b32.xlu0 %v286, 32
    %v291 = vpop.permute.xlu0 %290
    %v293 = vmul.f32 %v288, %v291
    %v294 = vtanh.pop %v293
    %296 = vrot.lane.b32.xlu0 %v294, 64
    %v297 = vpop.permute.xlu0 %296
    %v299 = vmul.f32 %v288, %v297
    %v300 = vpack.c.bf16 %v227, %v227
    %v302 = vrot.slane %v300, 1
    %303 = vrot.lane.b32.xlu0 %v302, 64
    %v304 = vpop.permute.xlu0 %303
    %v306 = vsel %vm155, %v304, 0
    %308 = vmatprep.subr.bf16.mxu0 0
    %309 = vmatpush1.bf16.msra.mxu0 %v151
    %310 = vmatprep.subr.bf16.mxu0 0
    %311 = vmatpush1.bf16.msra.mxu0 %v152
    %312 = vmatprep.subr.bf16.mxu0 0
    %313 = vmatpush1.bf16.msra.mxu0 0
    %314 = vmatprep.subr.bf16.mxu0 0
    %315 = vmatpush1.bf16.msra.mxu0 0
    %316 = vmatprep.subr.bf16.mxu0 0
    %317 = vmatpush1.bf16.msra.mxu0 0
    %318 = vmatprep.subr.bf16.mxu0 0
    %319 = vmatpush1.bf16.msra.mxu0 0
    %320 = vmatprep.subr.bf16.mxu0 0
    %321 = vmatpush1.bf16.msra.mxu0 0
    %322 = vmatprep.subr.bf16.mxu0 0
    %323 = vmatpush1.bf16.msra.mxu0 0
    %324 = vmatprep.subr.bf16.mxu0 0
    %325 = vmatpush1.bf16.msra.mxu0 0
    %326 = vmatprep.subr.bf16.mxu0 0
    %327 = vmatpush1.bf16.msra.mxu0 0
    %328 = vmatprep.subr.bf16.mxu0 0
    %329 = vmatpush1.bf16.msra.mxu0 0
    %330 = vmatprep.subr.bf16.mxu0 0
    %331 = vmatpush1.bf16.msra.mxu0 0
    %332 = vmatprep.subr.bf16.mxu0 0
    %333 = vmatpush1.bf16.msra.mxu0 0
    %334 = vmatprep.subr.bf16.mxu0 0
    %335 = vmatpush1.bf16.msra.mxu0 0
    %336 = vmatprep.subr.bf16.mxu0 0
    %337 = vmatpush1.bf16.msra.mxu0 0
    %338 = vmatprep.subr.bf16.mxu0 0
    %339 = vmatpush1.bf16.msra.mxu0 0
    %340 = vmatprep.mubr.bf16.mxu0 0
    %341 = vmatmul.mubr.bf16.gmra.mrb[0].mxu0 %v306
    %v342 = vpop.f32.mrb[0].mxu0
    %v343 = vadd.f32 0.0, %v342
    %v344 = vpop.f32.mrb[0].mxu0
    %v345 = vpop.f32.mrb[0].mxu0
    %v346 = vpop.f32.mrb[0].mxu0
    %347 = vdwg.mxu0
    %v349 = vrot.slane %v343, 4
    %v351 = vadd.f32 %v119, %v349
    %v352 = vtanh.pop %v351
    %v353 = vmul.f32 %v352, 0.5
    %v354 = vadd.f32 %v353, 0.5
    %v356 = vrot.slane %v221, 6
    %v358 = vmul.f32 %v354, %v356
    %360 = vrot.lane.b32.xlu0 %v352, 32
    %v361 = vpop.permute.xlu0 %360
    %v363 = vmul.f32 %v354, %v361
    %365 = vrot.lane.b32.xlu0 %v363, 32
    %v366 = vpop.permute.xlu0 %365
    %v368 = vadd.f32 %v358, %v366
    %v369 = vtanh.pop %v368
    %371 = vrot.lane.b32.xlu0 %v369, 32
    %v372 = vpop.permute.xlu0 %371
    %v374 = vmul.f32 %v354, %v372
    %376 = vrot.lane.b32.xlu0 %v227, 64
    %v377 = vpop.permute.xlu0 %376
    %v380 = vrot.slane %v299, 6
    %381 = vrot.lane.b32.xlu0 %v380, 96
    %v382 = vpop.permute.xlu0 %381
    %v384 = vsel %vm155, %v377, %v382
    %v385 = vpack.c.bf16 %v384, %v384
    %v387 = vrot.slane %v385, 1
    %v392 = vunpack.c.l.b16 %v53
    %v393 = vunpack.c.l.b16 %v54
    %v394 = vunpack.c.l.b16 %v55
    %v395 = vunpack.c.l.b16 %v56
    %v396 = vpack.c.b16 %v393, %v392
    %v397 = vpack.c.b16 %v395, %v394
    %vm400 = vcmask 523264
    %v402 = vsel %vm400, %v387, 0
    %404 = vmatprep.subr.bf16.mxu0 0
    %405 = vmatpush1.bf16.msra.mxu0 %v242
    %406 = vmatprep.subr.bf16.mxu0 0
    %407 = vmatpush1.bf16.msra.mxu0 %v243
    %408 = vmatprep.subr.bf16.mxu0 0
    %409 = vmatpush1.bf16.msra.mxu0 %v396
    %410 = vmatprep.subr.bf16.mxu0 0
    %411 = vmatpush1.bf16.msra.mxu0 %v397
    %412 = vmatprep.subr.bf16.mxu0 0
    %413 = vmatpush1.bf16.msra.mxu0 0
    %414 = vmatprep.subr.bf16.mxu0 0
    %415 = vmatpush1.bf16.msra.mxu0 0
    %416 = vmatprep.subr.bf16.mxu0 0
    %417 = vmatpush1.bf16.msra.mxu0 0
    %418 = vmatprep.subr.bf16.mxu0 0
    %419 = vmatpush1.bf16.msra.mxu0 0
    %420 = vmatprep.subr.bf16.mxu0 0
    %421 = vmatpush1.bf16.msra.mxu0 0
    %422 = vmatprep.subr.bf16.mxu0 0
    %423 = vmatpush1.bf16.msra.mxu0 0
    %424 = vmatprep.subr.bf16.mxu0 0
    %425 = vmatpush1.bf16.msra.mxu0 0
    %426 = vmatprep.subr.bf16.mxu0 0
    %427 = vmatpush1.bf16.msra.mxu0 0
    %428 = vmatprep.subr.bf16.mxu0 0
    %429 = vmatpush1.bf16.msra.mxu0 0
    %430 = vmatprep.subr.bf16.mxu0 0
    %431 = vmatpush1.bf16.msra.mxu0 0
    %432 = vmatprep.subr.bf16.mxu0 0
    %433 = vmatpush1.bf16.msra.mxu0 0
    %434 = vmatprep.subr.bf16.mxu0 0
    %435 = vmatpush1.bf16.msra.mxu0 0
    %436 = vmatprep.mubr.bf16.mxu0 0
    %437 = vmatmul.mubr.bf16.gmra.mrb[0].mxu0 %v402
    %v438 = vpop.f32.mrb[0].mxu0
    %v439 = vadd.f32 %v232, %v438
    %v440 = vpop.f32.mrb[0].mxu0
    %v441 = vpop.f32.mrb[0].mxu0
    %v442 = vpop.f32.mrb[0].mxu0
    %443 = vdwg.mxu0
    %v444 = vtanh.pop %v439
    %v445 = vmul.f32 %v444, 0.5
    %v446 = vadd.f32 %v445, 0.5
    %448 = vrot.lane.b32.xlu0 %v293, 32
    %v449 = vpop.permute.xlu0 %448
    %v451 = vmul.f32 %v446, %v449
    %453 = vrot.lane.b32.xlu0 %v444, 32
    %v454 = vpop.permute.xlu0 %453
    %v456 = vmul.f32 %v446, %v454
    %458 = vrot.lane.b32.xlu0 %v456, 32
    %v459 = vpop.permute.xlu0 %458
    %v461 = vadd.f32 %v451, %v459
    %v462 = vtanh.pop %v461
    %464 = vrot.lane.b32.xlu0 %v462, 32
    %v465 = vpop.permute.xlu0 %464
    %v467 = vmul.f32 %v446, %v465
    %v468 = vpack.c.bf16 %v374, %v374
    %v470 = vrot.slane %v468, 2
    %471 = vrot.lane.b32.xlu0 %v470, 64
    %v472 = vpop.permute.xlu0 %471
    %v474 = vsel %vm155, %v472, 0
    %476 = vmatprep.subr.bf16.mxu0 0
    %477 = vmatpush1.bf16.msra.mxu0 %v151
    %478 = vmatprep.subr.bf16.mxu0 0
    %479 = vmatpush1.bf16.msra.mxu0 %v152
    %480 = vmatprep.subr.bf16.mxu0 0
    %481 = vmatpush1.bf16.msra.mxu0 0
    %482 = vmatprep.subr.bf16.mxu0 0
    %483 = vmatpush1.bf16.msra.mxu0 0
    %484 = vmatprep.subr.bf16.mxu0 0
    %485 = vmatpush1.bf16.msra.mxu0 0
    %486 = vmatprep.subr.bf16.mxu0 0
    %487 = vmatpush1.bf16.msra.mxu0 0
    %488 = vmatprep.subr.bf16.mxu0 0
    %489 = vmatpush1.bf16.msra.mxu0 0
    %490 = vmatprep.subr.bf16.mxu0 0
    %491 = vmatpush1.bf16.msra.mxu0 0
    %492 = vmatprep.subr.bf16.mxu0 0
    %493 = vmatpush1.bf16.msra.mxu0 0
    %494 = vmatprep.subr.bf16.mxu0 0
    %495 = vmatpush1.bf16.msra.mxu0 0
    %496 = vmatprep.subr.bf16.mxu0 0
    %497 = vmatpush1.bf16.msra.mxu0 0
    %498 = vmatprep.subr.bf16.mxu0 0
    %499 = vmatpush1.bf16.msra.mxu0 0
    %500 = vmatprep.subr.bf16.mxu0 0
    %501 = vmatpush1.bf16.msra.mxu0 0
    %502 = vmatprep.subr.bf16.mxu0 0
    %503 = vmatpush1.bf16.msra.mxu0 0
    %504 = vmatprep.subr.bf16.mxu0 0
    %505 = vmatpush1.bf16.msra.mxu0 0
    %506 = vmatprep.subr.bf16.mxu0 0
    %507 = vmatpush1.bf16.msra.mxu0 0
    %508 = vmatprep.mubr.bf16.mxu0 0
    %509 = vmatmul.mubr.bf16.gmra.mrb[0].mxu0 %v474
    %v510 = vpop.f32.mrb[0].mxu0
    %v511 = vadd.f32 0.0, %v510
    %v512 = vpop.f32.mrb[0].mxu0
    %v513 = vpop.f32.mrb[0].mxu0
    %v514 = vpop.f32.mrb[0].mxu0
    %515 = vdwg.mxu0
    %v517 = vrot.slane %v511, 2
    %v519 = vadd.f32 %v119, %v517
    %v520 = vtanh.pop %v519
    %v521 = vmul.f32 %v520, 0.5
    %v522 = vadd.f32 %v521, 0.5
    %v524 = vrot.slane %v368, 6
    %v526 = vmul.f32 %v522, %v524
    %528 = vrot.lane.b32.xlu0 %v520, 32
    %v529 = vpop.permute.xlu0 %528
    %v531 = vmul.f32 %v522, %v529
    %533 = vrot.lane.b32.xlu0 %v531, 32
    %v534 = vpop.permute.xlu0 %533
    %v536 = vadd.f32 %v526, %v534
    %v537 = vtanh.pop %v536
    %539 = vrot.lane.b32.xlu0 %v537, 32
    %v540 = vpop.permute.xlu0 %539
    %v542 = vmul.f32 %v522, %v540
    %544 = vrot.lane.b32.xlu0 %v374, 64
    %v545 = vpop.permute.xlu0 %544
    %v548 = vrot.slane %v467, 4
    %549 = vrot.lane.b32.xlu0 %v548, 96
    %v550 = vpop.permute.xlu0 %549
    %v552 = vsel %vm155, %v545, %v550
    %v553 = vpack.c.bf16 %v552, %v552
    %v555 = vrot.slane %v553, 2
    %v557 = vsel %vm400, %v555, 0
    %559 = vmatprep.subr.bf16.mxu0 0
    %560 = vmatpush1.bf16.msra.mxu0 %v242
    %561 = vmatprep.subr.bf16.mxu0 0
    %562 = vmatpush1.bf16.msra.mxu0 %v243
    %563 = vmatprep.subr.bf16.mxu0 0
    %564 = vmatpush1.bf16.msra.mxu0 %v396
    %565 = vmatprep.subr.bf16.mxu0 0
    %566 = vmatpush1.bf16.msra.mxu0 %v397
    %567 = vmatprep.subr.bf16.mxu0 0
    %568 = vmatpush1.bf16.msra.mxu0 0
    %569 = vmatprep.subr.bf16.mxu0 0
    %570 = vmatpush1.bf16.msra.mxu0 0
    %571 = vmatprep.subr.bf16.mxu0 0
    %572 = vmatpush1.bf16.msra.mxu0 0
    %573 = vmatprep.subr.bf16.mxu0 0
    %574 = vmatpush1.bf16.msra.mxu0 0
    %575 = vmatprep.subr.bf16.mxu0 0
    %576 = vmatpush1.bf16.msra.mxu0 0
    %577 = vmatprep.subr.bf16.mxu0 0
    %578 = vmatpush1.bf16.msra.mxu0 0
    %579 = vmatprep.subr.bf16.mxu0 0
    %580 = vmatpush1.bf16.msra.mxu0 0
    %581 = vmatprep.subr.bf16.mxu0 0
    %582 = vmatpush1.bf16.msra.mxu0 0
    %583 = vmatprep.subr.bf16.mxu0 0
    %584 = vmatpush1.bf16.msra.mxu0 0
    %585 = vmatprep.subr.bf16.mxu0 0
    %586 = vmatpush1.bf16.msra.mxu0 0
    %587 = vmatprep.subr.bf16.mxu0 0
    %588 = vmatpush1.bf16.msra.mxu0 0
    %589 = vmatprep.subr.bf16.mxu0 0
    %590 = vmatpush1.bf16.msra.mxu0 0
    %591 = vmatprep.mubr.bf16.mxu0 0
    %592 = vmatmul.mubr.bf16.gmra.mrb[0].mxu0 %v557
    %v593 = vpop.f32.mrb[0].mxu0
    %v594 = vadd.f32 %v232, %v593
    %v595 = vpop.f32.mrb[0].mxu0
    %v596 = vpop.f32.mrb[0].mxu0
    %v597 = vpop.f32.mrb[0].mxu0
    %598 = vdwg.mxu0
    %v599 = vtanh.pop %v594
    %v600 = vmul.f32 %v599, 0.5
    %v601 = vadd.f32 %v600, 0.5
    %v602 = vmul.f32 %v601, %v461
    %604 = vrot.lane.b32.xlu0 %v599, 32
    %v605 = vpop.permute.xlu0 %604
    %v607 = vmul.f32 %v601, %v605
    %609 = vrot.lane.b32.xlu0 %v607, 32
    %v610 = vpop.permute.xlu0 %609
    %v612 = vadd.f32 %v602, %v610
    %v613 = vtanh.pop %v612
    %615 = vrot.lane.b32.xlu0 %v613, 32
    %v616 = vpop.permute.xlu0 %615
    %v618 = vmul.f32 %v601, %v616
    %v619 = vpack.c.bf16 %v542, %v542
    %v621 = vrot.slane %v619, 3
    %622 = vrot.lane.b32.xlu0 %v621, 64
    %v623 = vpop.permute.xlu0 %622
    %v625 = vsel %vm155, %v623, 0
    %627 = vmatprep.subr.bf16.mxu0 0
    %628 = vmatpush1.bf16.msra.mxu0 %v151
    %629 = vmatprep.subr.bf16.mxu0 0
    %630 = vmatpush1.bf16.msra.mxu0 %v152
    %631 = vmatprep.subr.bf16.mxu0 0
    %632 = vmatpush1.bf16.msra.mxu0 0
    %633 = vmatprep.subr.bf16.mxu0 0
    %634 = vmatpush1.bf16.msra.mxu0 0
    %635 = vmatprep.subr.bf16.mxu0 0
    %636 = vmatpush1.bf16.msra.mxu0 0
    %637 = vmatprep.subr.bf16.mxu0 0
    %638 = vmatpush1.bf16.msra.mxu0 0
    %639 = vmatprep.subr.bf16.mxu0 0
    %640 = vmatpush1.bf16.msra.mxu0 0
    %641 = vmatprep.subr.bf16.mxu0 0
    %642 = vmatpush1.bf16.msra.mxu0 0
    %643 = vmatprep.subr.bf16.mxu0 0
    %644 = vmatpush1.bf16.msra.mxu0 0
    %645 = vmatprep.subr.bf16.mxu0 0
    %646 = vmatpush1.bf16.msra.mxu0 0
    %647 = vmatprep.subr.bf16.mxu0 0
    %648 = vmatpush1.bf16.msra.mxu0 0
    %649 = vmatprep.subr.bf16.mxu0 0
    %650 = vmatpush1.bf16.msra.mxu0 0
    %651 = vmatprep.subr.bf16.mxu0 0
    %652 = vmatpush1.bf16.msra.mxu0 0
    %653 = vmatprep.subr.bf16.mxu0 0
    %654 = vmatpush1.bf16.msra.mxu0 0
    %655 = vmatprep.subr.bf16.mxu0 0
    %656 = vmatpush1.bf16.msra.mxu0 0
    %657 = vmatprep.subr.bf16.mxu0 0
    %658 = vmatpush1.bf16.msra.mxu0 0
    %659 = vmatprep.mubr.bf16.mxu0 0
    %660 = vmatmul.mubr.bf16.gmra.mrb[0].mxu0 %v625
    %v661 = vpop.f32.mrb[0].mxu0
    %v662 = vadd.f32 0.0, %v661
    %v663 = vpop.f32.mrb[0].mxu0
    %v664 = vpop.f32.mrb[0].mxu0
    %v665 = vpop.f32.mrb[0].mxu0
    %666 = vdwg.mxu0
    %v667 = vadd.f32 %v122, %v662
    %v668 = vtanh.pop %v667
    %v669 = vmul.f32 %v668, 0.5
    %v670 = vadd.f32 %v669, 0.5
    %v672 = vrot.slane %v536, 6
    %v674 = vmul.f32 %v670, %v672
    %676 = vrot.lane.b32.xlu0 %v668, 32
    %v677 = vpop.permute.xlu0 %676
    %v679 = vmul.f32 %v670, %v677
    %681 = vrot.lane.b32.xlu0 %v679, 32
    %v682 = vpop.permute.xlu0 %681
    %v684 = vadd.f32 %v674, %v682
    %v685 = vtanh.pop %v684
    %687 = vrot.lane.b32.xlu0 %v685, 32
    %v688 = vpop.permute.xlu0 %687
    %v690 = vmul.f32 %v670, %v688
    %692 = vrot.lane.b32.xlu0 %v542, 64
    %v693 = vpop.permute.xlu0 %692
    %v696 = vrot.slane %v618, 2
    %697 = vrot.lane.b32.xlu0 %v696, 96
    %v698 = vpop.permute.xlu0 %697
    %v700 = vsel %vm155, %v693, %v698
    %v701 = vpack.c.bf16 %v700, %v700
    %v703 = vrot.slane %v701, 3
    %v705 = vsel %vm400, %v703, 0
    %707 = vmatprep.subr.bf16.mxu0 0
    %708 = vmatpush1.bf16.msra.mxu0 %v242
    %709 = vmatprep.subr.bf16.mxu0 0
    %710 = vmatpush1.bf16.msra.mxu0 %v243
    %711 = vmatprep.subr.bf16.mxu0 0
    %712 = vmatpush1.bf16.msra.mxu0 %v396
    %713 = vmatprep.subr.bf16.mxu0 0
    %714 = vmatpush1.bf16.msra.mxu0 %v397
    %715 = vmatprep.subr.bf16.mxu0 0
    %716 = vmatpush1.bf16.msra.mxu0 0
    %717 = vmatprep.subr.bf16.mxu0 0
    %718 = vmatpush1.bf16.msra.mxu0 0
    %719 = vmatprep.subr.bf16.mxu0 0
    %720 = vmatpush1.bf16.msra.mxu0 0
    %721 = vmatprep.subr.bf16.mxu0 0
    %722 = vmatpush1.bf16.msra.mxu0 0
    %723 = vmatprep.subr.bf16.mxu0 0
    %724 = vmatpush1.bf16.msra.mxu0 0
    %725 = vmatprep.subr.bf16.mxu0 0
    %726 = vmatpush1.bf16.msra.mxu0 0
    %727 = vmatprep.subr.bf16.mxu0 0
    %728 = vmatpush1.bf16.msra.mxu0 0
    %729 = vmatprep.subr.bf16.mxu0 0
    %730 = vmatpush1.bf16.msra.mxu0 0
    %731 = vmatprep.subr.bf16.mxu0 0
    %732 = vmatpush1.bf16.msra.mxu0 0
    %733 = vmatprep.subr.bf16.mxu0 0
    %734 = vmatpush1.bf16.msra.mxu0 0
    %735 = vmatprep.subr.bf16.mxu0 0
    %736 = vmatpush1.bf16.msra.mxu0 0
    %737 = vmatprep.subr.bf16.mxu0 0
    %738 = vmatpush1.bf16.msra.mxu0 0
    %739 = vmatprep.mubr.bf16.mxu0 0
    %740 = vmatmul.mubr.bf16.gmra.mrb[0].mxu0 %v705
    %v741 = vpop.f32.mrb[0].mxu0
    %v742 = vadd.f32 %v232, %v741
    %v743 = vpop.f32.mrb[0].mxu0
    %v744 = vpop.f32.mrb[0].mxu0
    %v745 = vpop.f32.mrb[0].mxu0
    %746 = vdwg.mxu0
    %v747 = vtanh.pop %v742
    %v748 = vmul.f32 %v747, 0.5
    %v749 = vadd.f32 %v748, 0.5
    %v750 = vmul.f32 %v749, %v612
    %752 = vrot.lane.b32.xlu0 %v747, 32
    %v753 = vpop.permute.xlu0 %752
    %v755 = vmul.f32 %v749, %v753
    %757 = vrot.lane.b32.xlu0 %v755, 32
    %v758 = vpop.permute.xlu0 %757
    %v760 = vadd.f32 %v750, %v758
    %v761 = vtanh.pop %v760
    %763 = vrot.lane.b32.xlu0 %v761, 32
    %v764 = vpop.permute.xlu0 %763
    %v766 = vmul.f32 %v749, %v764
    %v767 = vpack.c.bf16 %v690, %v690
    %769 = vrot.lane.b32.xlu0 %v767, 64
    %v770 = vpop.permute.xlu0 %769
    %v772 = vsel %vm155, %v770, 0
    %774 = vmatprep.subr.bf16.mxu0 0
    %775 = vmatpush1.bf16.msra.mxu0 %v151
    %776 = vmatprep.subr.bf16.mxu0 0
    %777 = vmatpush1.bf16.msra.mxu0 %v152
    %778 = vmatprep.subr.bf16.mxu0 0
    %779 = vmatpush1.bf16.msra.mxu0 0
    %780 = vmatprep.subr.bf16.mxu0 0
    %781 = vmatpush1.bf16.msra.mxu0 0
    %782 = vmatprep.subr.bf16.mxu0 0
    %783 = vmatpush1.bf16.msra.mxu0 0
    %784 = vmatprep.subr.bf16.mxu0 0
    %785 = vmatpush1.bf16.msra.mxu0 0
    %786 = vmatprep.subr.bf16.mxu0 0
    %787 = vmatpush1.bf16.msra.mxu0 0
    %788 = vmatprep.subr.bf16.mxu0 0
    %789 = vmatpush1.bf16.msra.mxu0 0
    %790 = vmatprep.subr.bf16.mxu0 0
    %791 = vmatpush1.bf16.msra.mxu0 0
    %792 = vmatprep.subr.bf16.mxu0 0
    %793 = vmatpush1.bf16.msra.mxu0 0
    %794 = vmatprep.subr.bf16.mxu0 0
    %795 = vmatpush1.bf16.msra.mxu0 0
    %796 = vmatprep.subr.bf16.mxu0 0
    %797 = vmatpush1.bf16.msra.mxu0 0
    %798 = vmatprep.subr.bf16.mxu0 0
    %799 = vmatpush1.bf16.msra.mxu0 0
    %800 = vmatprep.subr.bf16.mxu0 0
    %801 = vmatpush1.bf16.msra.mxu0 0
    %802 = vmatprep.subr.bf16.mxu0 0
    %803 = vmatpush1.bf16.msra.mxu0 0
    %804 = vmatprep.subr.bf16.mxu0 0
    %805 = vmatpush1.bf16.msra.mxu0 0
    %806 = vmatprep.mubr.bf16.mxu0 0
    %807 = vmatmul.mubr.bf16.gmra.mrb[0].mxu0 %v772
    %v808 = vpop.f32.mrb[0].mxu0
    %v809 = vadd.f32 0.0, %v808
    %v810 = vpop.f32.mrb[0].mxu0
    %v811 = vpop.f32.mrb[0].mxu0
    %v812 = vpop.f32.mrb[0].mxu0
    %813 = vdwg.mxu0
    %v815 = vrot.slane %v809, 6
    %v817 = vadd.f32 %v122, %v815
    %v818 = vtanh.pop %v817
    %v819 = vmul.f32 %v818, 0.5
    %v820 = vadd.f32 %v819, 0.5
    %v822 = vrot.slane %v684, 6
    %v824 = vmul.f32 %v820, %v822
    %826 = vrot.lane.b32.xlu0 %v818, 32
    %v827 = vpop.permute.xlu0 %826
    %v829 = vmul.f32 %v820, %v827
    %831 = vrot.lane.b32.xlu0 %v829, 32
    %v832 = vpop.permute.xlu0 %831
    %v834 = vadd.f32 %v824, %v832
    %v835 = vtanh.pop %v834
    %837 = vrot.lane.b32.xlu0 %v835, 32
    %v838 = vpop.permute.xlu0 %837
    %v840 = vmul.f32 %v820, %v838
    %842 = vrot.lane.b32.xlu0 %v690, 64
    %v843 = vpop.permute.xlu0 %842
    %846 = vrot.lane.b32.xlu0 %v766, 96
    %v847 = vpop.permute.xlu0 %846
    %v849 = vsel %vm155, %v843, %v847
    %v850 = vpack.c.bf16 %v849, %v849
    %v852 = vsel %vm400, %v850, 0
    %854 = vmatprep.subr.bf16.mxu0 0
    %855 = vmatpush1.bf16.msra.mxu0 %v242
    %856 = vmatprep.subr.bf16.mxu0 0
    %857 = vmatpush1.bf16.msra.mxu0 %v243
    %858 = vmatprep.subr.bf16.mxu0 0
    %859 = vmatpush1.bf16.msra.mxu0 %v396
    %860 = vmatprep.subr.bf16.mxu0 0
    %861 = vmatpush1.bf16.msra.mxu0 %v397
    %862 = vmatprep.subr.bf16.mxu0 0
    %863 = vmatpush1.bf16.msra.mxu0 0
    %864 = vmatprep.subr.bf16.mxu0 0
    %865 = vmatpush1.bf16.msra.mxu0 0
    %866 = vmatprep.subr.bf16.mxu0 0
    %867 = vmatpush1.bf16.msra.mxu0 0
    %868 = vmatprep.subr.bf16.mxu0 0
    %869 = vmatpush1.bf16.msra.mxu0 0
    %870 = vmatprep.subr.bf16.mxu0 0
    %871 = vmatpush1.bf16.msra.mxu0 0
    %872 = vmatprep.subr.bf16.mxu0 0
    %873 = vmatpush1.bf16.msra.mxu0 0
    %874 = vmatprep.subr.bf16.mxu0 0
    %875 = vmatpush1.bf16.msra.mxu0 0
    %876 = vmatprep.subr.bf16.mxu0 0
    %877 = vmatpush1.bf16.msra.mxu0 0
    %878 = vmatprep.subr.bf16.mxu0 0
    %879 = vmatpush1.bf16.msra.mxu0 0
    %880 = vmatprep.subr.bf16.mxu0 0
    %881 = vmatpush1.bf16.msra.mxu0 0
    %882 = vmatprep.subr.bf16.mxu0 0
    %883 = vmatpush1.bf16.msra.mxu0 0
    %884 = vmatprep.subr.bf16.mxu0 0
    %885 = vmatpush1.bf16.msra.mxu0 0
    %886 = vmatprep.mubr.bf16.mxu0 0
    %887 = vmatmul.mubr.bf16.gmra.mrb[0].mxu0 %v852
    %v888 = vpop.f32.mrb[0].mxu0
    %v889 = vadd.f32 %v232, %v888
    %v890 = vpop.f32.mrb[0].mxu0
    %v891 = vpop.f32.mrb[0].mxu0
    %v892 = vpop.f32.mrb[0].mxu0
    %893 = vdwg.mxu0
    %v894 = vtanh.pop %v889
    %v895 = vmul.f32 %v894, 0.5
    %v896 = vadd.f32 %v895, 0.5
    %v897 = vmul.f32 %v896, %v760
    %899 = vrot.lane.b32.xlu0 %v894, 32
    %v900 = vpop.permute.xlu0 %899
    %v902 = vmul.f32 %v896, %v900
    %904 = vrot.lane.b32.xlu0 %v902, 32
    %v905 = vpop.permute.xlu0 %904
    %v907 = vadd.f32 %v897, %v905
    %v908 = vtanh.pop %v907
    %910 = vrot.lane.b32.xlu0 %v908, 32
    %v911 = vpop.permute.xlu0 %910
    %v913 = vmul.f32 %v896, %v911
    %v914 = vpack.c.bf16 %v840, %v840
    %v916 = vrot.slane %v914, 1
    %917 = vrot.lane.b32.xlu0 %v916, 64
    %v918 = vpop.permute.xlu0 %917
    %v920 = vsel %vm155, %v918, 0
    %922 = vmatprep.subr.bf16.mxu0 0
    %923 = vmatpush1.bf16.msra.mxu0 %v151
    %924 = vmatprep.subr.bf16.mxu0 0
    %925 = vmatpush1.bf16.msra.mxu0 %v152
    %926 = vmatprep.subr.bf16.mxu0 0
    %927 = vmatpush1.bf16.msra.mxu0 0
    %928 = vmatprep.subr.bf16.mxu0 0
    %929 = vmatpush1.bf16.msra.mxu0 0
    %930 = vmatprep.subr.bf16.mxu0 0
    %931 = vmatpush1.bf16.msra.mxu0 0
    %932 = vmatprep.subr.bf16.mxu0 0
    %933 = vmatpush1.bf16.msra.mxu0 0
    %934 = vmatprep.subr.bf16.mxu0 0
    %935 = vmatpush1.bf16.msra.mxu0 0
    %936 = vmatprep.subr.bf16.mxu0 0
    %937 = vmatpush1.bf16.msra.mxu0 0
    %938 = vmatprep.subr.bf16.mxu0 0
    %939 = vmatpush1.bf16.msra.mxu0 0
    %940 = vmatprep.subr.bf16.mxu0 0
    %941 = vmatpush1.bf16.msra.mxu0 0
    %942 = vmatprep.subr.bf16.mxu0 0
    %943 = vmatpush1.bf16.msra.mxu0 0
    %944 = vmatprep.subr.bf16.mxu0 0
    %945 = vmatpush1.bf16.msra.mxu0 0
    %946 = vmatprep.subr.bf16.mxu0 0
    %947 = vmatpush1.bf16.msra.mxu0 0
    %948 = vmatprep.subr.bf16.mxu0 0
    %949 = vmatpush1.bf16.msra.mxu0 0
    %950 = vmatprep.subr.bf16.mxu0 0
    %951 = vmatpush1.bf16.msra.mxu0 0
    %952 = vmatprep.subr.bf16.mxu0 0
    %953 = vmatpush1.bf16.msra.mxu0 0
    %954 = vmatprep.mubr.bf16.mxu0 0
    %955 = vmatmul.mubr.bf16.gmra.mrb[0].mxu0 %v920
    %v956 = vpop.f32.mrb[0].mxu0
    %v957 = vadd.f32 0.0, %v956
    %v958 = vpop.f32.mrb[0].mxu0
    %v959 = vpop.f32.mrb[0].mxu0
    %v960 = vpop.f32.mrb[0].mxu0
    %961 = vdwg.mxu0
    %v963 = vrot.slane %v957, 4
    %v965 = vadd.f32 %v122, %v963
    %v966 = vtanh.pop %v965
    %v967 = vmul.f32 %v966, 0.5
    %v968 = vadd.f32 %v967, 0.5
    %v970 = vrot.slane %v834, 6
    %v972 = vmul.f32 %v968, %v970
    %974 = vrot.lane.b32.xlu0 %v966, 32
    %v975 = vpop.permute.xlu0 %974
    %v977 = vmul.f32 %v968, %v975
    %979 = vrot.lane.b32.xlu0 %v977, 32
    %v980 = vpop.permute.xlu0 %979
    %v982 = vadd.f32 %v972, %v980
    %v983 = vtanh.pop %v982
    %985 = vrot.lane.b32.xlu0 %v983, 32
    %v986 = vpop.permute.xlu0 %985
    %v988 = vmul.f32 %v968, %v986
    %990 = vrot.lane.b32.xlu0 %v840, 64
    %v991 = vpop.permute.xlu0 %990
    %v994 = vrot.slane %v913, 6
    %995 = vrot.lane.b32.xlu0 %v994, 96
    %v996 = vpop.permute.xlu0 %995
    %v998 = vsel %vm155, %v991, %v996
    %v999 = vpack.c.bf16 %v998, %v998
    %v1001 = vrot.slane %v999, 1
    %v1003 = vsel %vm400, %v1001, 0
    %1005 = vmatprep.subr.bf16.mxu0 0
    %1006 = vmatpush1.bf16.msra.mxu0 %v242
    %1007 = vmatprep.subr.bf16.mxu0 0
    %1008 = vmatpush1.bf16.msra.mxu0 %v243
    %1009 = vmatprep.subr.bf16.mxu0 0
    %1010 = vmatpush1.bf16.msra.mxu0 %v396
    %1011 = vmatprep.subr.bf16.mxu0 0
    %1012 = vmatpush1.bf16.msra.mxu0 %v397
    %1013 = vmatprep.subr.bf16.mxu0 0
    %1014 = vmatpush1.bf16.msra.mxu0 0
    %1015 = vmatprep.subr.bf16.mxu0 0
    %1016 = vmatpush1.bf16.msra.mxu0 0
    %1017 = vmatprep.subr.bf16.mxu0 0
    %1018 = vmatpush1.bf16.msra.mxu0 0
    %1019 = vmatprep.subr.bf16.mxu0 0
    %1020 = vmatpush1.bf16.msra.mxu0 0
    %1021 = vmatprep.subr.bf16.mxu0 0
    %1022 = vmatpush1.bf16.msra.mxu0 0
    %1023 = vmatprep.subr.bf16.mxu0 0
    %1024 = vmatpush1.bf16.msra.mxu0 0
    %1025 = vmatprep.subr.bf16.mxu0 0
    %1026 = vmatpush1.bf16.msra.mxu0 0
    %1027 = vmatprep.subr.bf16.mxu0 0
    %1028 = vmatpush1.bf16.msra.mxu0 0
    %1029 = vmatprep.subr.bf16.mxu0 0
    %1030 = vmatpush1.bf16.msra.mxu0 0
    %1031 = vmatprep.subr.bf16.mxu0 0
    %1032 = vmatpush1.bf16.msra.mxu0 0
    %1033 = vmatprep.subr.bf16.mxu0 0
    %1034 = vmatpush1.bf16.msra.mxu0 0
    %1035 = vmatprep.subr.bf16.mxu0 0
    %1036 = vmatpush1.bf16.msra.mxu0 0
    %1037 = vmatprep.mubr.bf16.mxu0 0
    %1038 = vmatmul.mubr.bf16.gmra.mrb[0].mxu0 %v1003
    %v1039 = vpop.f32.mrb[0].mxu0
    %v1040 = vadd.f32 %v232, %v1039
    %v1041 = vpop.f32.mrb[0].mxu0
    %v1042 = vpop.f32.mrb[0].mxu0
    %v1043 = vpop.f32.mrb[0].mxu0
    %1044 = vdwg.mxu0
    %v1045 = vtanh.pop %v1040
    %v1046 = vmul.f32 %v1045, 0.5
    %v1047 = vadd.f32 %v1046, 0.5
    %v1048 = vmul.f32 %v1047, %v907
    %1050 = vrot.lane.b32.xlu0 %v1045, 32
    %v1051 = vpop.permute.xlu0 %1050
    %v1053 = vmul.f32 %v1047, %v1051
    %1055 = vrot.lane.b32.xlu0 %v1053, 32
    %v1056 = vpop.permute.xlu0 %1055
    %v1058 = vadd.f32 %v1048, %v1056
    %v1059 = vtanh.pop %v1058
    %1061 = vrot.lane.b32.xlu0 %v1059, 32
    %v1062 = vpop.permute.xlu0 %1061
    %v1064 = vmul.f32 %v1047, %v1062
    %v1065 = vpack.c.bf16 %v988, %v988
    %v1067 = vrot.slane %v1065, 2
    %1068 = vrot.lane.b32.xlu0 %v1067, 64
    %v1069 = vpop.permute.xlu0 %1068
    %v1071 = vsel %vm155, %v1069, 0
    %1073 = vmatprep.subr.bf16.mxu0 0
    %1074 = vmatpush1.bf16.msra.mxu0 %v151
    %1075 = vmatprep.subr.bf16.mxu0 0
    %1076 = vmatpush1.bf16.msra.mxu0 %v152
    %1077 = vmatprep.subr.bf16.mxu0 0
    %1078 = vmatpush1.bf16.msra.mxu0 0
    %1079 = vmatprep.subr.bf16.mxu0 0
    %1080 = vmatpush1.bf16.msra.mxu0 0
    %1081 = vmatprep.subr.bf16.mxu0 0
    %1082 = vmatpush1.bf16.msra.mxu0 0
    %1083 = vmatprep.subr.bf16.mxu0 0
    %1084 = vmatpush1.bf16.msra.mxu0 0
    %1085 = vmatprep.subr.bf16.mxu0 0
    %1086 = vmatpush1.bf16.msra.mxu0 0
    %1087 = vmatprep.subr.bf16.mxu0 0
    %1088 = vmatpush1.bf16.msra.mxu0 0
    %1089 = vmatprep.subr.bf16.mxu0 0
    %1090 = vmatpush1.bf16.msra.mxu0 0
    %1091 = vmatprep.subr.bf16.mxu0 0
    %1092 = vmatpush1.bf16.msra.mxu0 0
    %1093 = vmatprep.subr.bf16.mxu0 0
    %1094 = vmatpush1.bf16.msra.mxu0 0
    %1095 = vmatprep.subr.bf16.mxu0 0
    %1096 = vmatpush1.bf16.msra.mxu0 0
    %1097 = vmatprep.subr.bf16.mxu0 0
    %1098 = vmatpush1.bf16.msra.mxu0 0
    %1099 = vmatprep.subr.bf16.mxu0 0
    %1100 = vmatpush1.bf16.msra.mxu0 0
    %1101 = vmatprep.subr.bf16.mxu0 0
    %1102 = vmatpush1.bf16.msra.mxu0 0
    %1103 = vmatprep.subr.bf16.mxu0 0
    %1104 = vmatpush1.bf16.msra.mxu0 0
    %1105 = vmatprep.mubr.bf16.mxu0 0
    %1106 = vmatmul.mubr.bf16.gmra.mrb[0].mxu0 %v1071
    %v1107 = vpop.f32.mrb[0].mxu0
    %v1108 = vadd.f32 0.0, %v1107
    %v1109 = vpop.f32.mrb[0].mxu0
    %v1110 = vpop.f32.mrb[0].mxu0
    %v1111 = vpop.f32.mrb[0].mxu0
    %1112 = vdwg.mxu0
    %v1114 = vrot.slane %v1108, 2
    %v1116 = vadd.f32 %v122, %v1114
    %v1117 = vtanh.pop %v1116
    %v1118 = vmul.f32 %v1117, 0.5
    %v1119 = vadd.f32 %v1118, 0.5
    %v1121 = vrot.slane %v982, 6
    %v1123 = vmul.f32 %v1119, %v1121
    %1125 = vrot.lane.b32.xlu0 %v1117, 32
    %v1126 = vpop.permute.xlu0 %1125
    %v1128 = vmul.f32 %v1119, %v1126
    %1130 = vrot.lane.b32.xlu0 %v1128, 32
    %v1131 = vpop.permute.xlu0 %1130
    %v1133 = vadd.f32 %v1123, %v1131
    %v1134 = vtanh.pop %v1133
    %1136 = vrot.lane.b32.xlu0 %v1134, 32
    %v1137 = vpop.permute.xlu0 %1136
    %v1139 = vmul.f32 %v1119, %v1137
    %1141 = vrot.lane.b32.xlu0 %v988, 64
    %v1142 = vpop.permute.xlu0 %1141
    %v1145 = vrot.slane %v1064, 4
    %1146 = vrot.lane.b32.xlu0 %v1145, 96
    %v1147 = vpop.permute.xlu0 %1146
    %v1149 = vsel %vm155, %v1142, %v1147
    %v1150 = vpack.c.bf16 %v1149, %v1149
    %v1152 = vrot.slane %v1150, 2
    %v1154 = vsel %vm400, %v1152, 0
    %1156 = vmatprep.subr.bf16.mxu0 0
    %1157 = vmatpush1.bf16.msra.mxu0 %v242
    %1158 = vmatprep.subr.bf16.mxu0 0
    %1159 = vmatpush1.bf16.msra.mxu0 %v243
    %1160 = vmatprep.subr.bf16.mxu0 0
    %1161 = vmatpush1.bf16.msra.mxu0 %v396
    %1162 = vmatprep.subr.bf16.mxu0 0
    %1163 = vmatpush1.bf16.msra.mxu0 %v397
    %1164 = vmatprep.subr.bf16.mxu0 0
    %1165 = vmatpush1.bf16.msra.mxu0 0
    %1166 = vmatprep.subr.bf16.mxu0 0
    %1167 = vmatpush1.bf16.msra.mxu0 0
    %1168 = vmatprep.subr.bf16.mxu0 0
    %1169 = vmatpush1.bf16.msra.mxu0 0
    %1170 = vmatprep.subr.bf16.mxu0 0
    %1171 = vmatpush1.bf16.msra.mxu0 0
    %1172 = vmatprep.subr.bf16.mxu0 0
    %1173 = vmatpush1.bf16.msra.mxu0 0
    %1174 = vmatprep.subr.bf16.mxu0 0
    %1175 = vmatpush1.bf16.msra.mxu0 0
    %1176 = vmatprep.subr.bf16.mxu0 0
    %1177 = vmatpush1.bf16.msra.mxu0 0
    %1178 = vmatprep.subr.bf16.mxu0 0
    %1179 = vmatpush1.bf16.msra.mxu0 0
    %1180 = vmatprep.subr.bf16.mxu0 0
    %1181 = vmatpush1.bf16.msra.mxu0 0
    %1182 = vmatprep.subr.bf16.mxu0 0
    %1183 = vmatpush1.bf16.msra.mxu0 0
    %1184 = vmatprep.subr.bf16.mxu0 0
    %1185 = vmatpush1.bf16.msra.mxu0 0
    %1186 = vmatprep.subr.bf16.mxu0 0
    %1187 = vmatpush1.bf16.msra.mxu0 0
    %1188 = vmatprep.mubr.bf16.mxu0 0
    %1189 = vmatmul.mubr.bf16.gmra.mrb[0].mxu0 %v1154
    %v1190 = vpop.f32.mrb[0].mxu0
    %v1191 = vadd.f32 %v232, %v1190
    %v1192 = vpop.f32.mrb[0].mxu0
    %v1193 = vpop.f32.mrb[0].mxu0
    %v1194 = vpop.f32.mrb[0].mxu0
    %1195 = vdwg.mxu0
    %v1196 = vtanh.pop %v1191
    %v1197 = vmul.f32 %v1196, 0.5
    %v1198 = vadd.f32 %v1197, 0.5
    %v1199 = vmul.f32 %v1198, %v1058
    %1201 = vrot.lane.b32.xlu0 %v1196, 32
    %v1202 = vpop.permute.xlu0 %1201
    %v1204 = vmul.f32 %v1198, %v1202
    %1206 = vrot.lane.b32.xlu0 %v1204, 32
    %v1207 = vpop.permute.xlu0 %1206
    %v1209 = vadd.f32 %v1199, %v1207
    %v1210 = vtanh.pop %v1209
    %1212 = vrot.lane.b32.xlu0 %v1210, 32
    %v1213 = vpop.permute.xlu0 %1212
    %v1215 = vmul.f32 %v1198, %v1213
    %1217 = vrot.lane.b32.xlu0 %v1139, 64
    %v1218 = vpop.permute.xlu0 %1217
    %v1221 = vrot.slane %v1215, 2
    %1222 = vrot.lane.b32.xlu0 %v1221, 96
    %v1223 = vpop.permute.xlu0 %1222
    %v1225 = vsel %vm155, %v1218, %v1223
    %v1226 = vpack.c.bf16 %v1225, %v1225
    %v1228 = vrot.slane %v1226, 3
    %v1230 = vsel %vm400, %v1228, 0
    %1232 = vmatprep.subr.bf16.mxu0 0
    %1233 = vmatpush1.bf16.msra.mxu0 %v242
    %1234 = vmatprep.subr.bf16.mxu0 0
    %1235 = vmatpush1.bf16.msra.mxu0 %v243
    %1236 = vmatprep.subr.bf16.mxu0 0
    %1237 = vmatpush1.bf16.msra.mxu0 %v396
    %1238 = vmatprep.subr.bf16.mxu0 0
    %1239 = vmatpush1.bf16.msra.mxu0 %v397
    %1240 = vmatprep.subr.bf16.mxu0 0
    %1241 = vmatpush1.bf16.msra.mxu0 0
    %1242 = vmatprep.subr.bf16.mxu0 0
    %1243 = vmatpush1.bf16.msra.mxu0 0
    %1244 = vmatprep.subr.bf16.mxu0 0
    %1245 = vmatpush1.bf16.msra.mxu0 0
    %1246 = vmatprep.subr.bf16.mxu0 0
    %1247 = vmatpush1.bf16.msra.mxu0 0
    %1248 = vmatprep.subr.bf16.mxu0 0
    %1249 = vmatpush1.bf16.msra.mxu0 0
    %1250 = vmatprep.subr.bf16.mxu0 0
    %1251 = vmatpush1.bf16.msra.mxu0 0
    %1252 = vmatprep.subr.bf16.mxu0 0
    %1253 = vmatpush1.bf16.msra.mxu0 0
    %1254 = vmatprep.subr.bf16.mxu0 0
    %1255 = vmatpush1.bf16.msra.mxu0 0
    %1256 = vmatprep.subr.bf16.mxu0 0
    %1257 = vmatpush1.bf16.msra.mxu0 0
    %1258 = vmatprep.subr.bf16.mxu0 0
    %1259 = vmatpush1.bf16.msra.mxu0 0
    %1260 = vmatprep.subr.bf16.mxu0 0
    %1261 = vmatpush1.bf16.msra.mxu0 0
    %1262 = vmatprep.subr.bf16.mxu0 0
    %1263 = vmatpush1.bf16.msra.mxu0 0
    %1264 = vmatprep.mubr.bf16.mxu0 0
    %1265 = vmatmul.mubr.bf16.gmra.mrb[0].mxu0 %v1230
    %v1266 = vpop.f32.mrb[0].mxu0
    %v1267 = vadd.f32 %v232, %v1266
    %v1268 = vpop.f32.mrb[0].mxu0
    %v1269 = vpop.f32.mrb[0].mxu0
    %v1270 = vpop.f32.mrb[0].mxu0
    %1271 = vdwg.mxu0
    %v1272 = vtanh.pop %v1267
    %v1273 = vmul.f32 %v1272, 0.5
    %v1274 = vadd.f32 %v1273, 0.5
    %v1275 = vmul.f32 %v1274, %v1209
    %1277 = vrot.lane.b32.xlu0 %v1272, 32
    %v1278 = vpop.permute.xlu0 %1277
    %v1280 = vmul.f32 %v1274, %v1278
    %1282 = vrot.lane.b32.xlu0 %v1280, 32
    %v1283 = vpop.permute.xlu0 %1282
    %v1285 = vadd.f32 %v1275, %v1283
    %v1286 = vtanh.pop %v1285
    %1288 = vrot.lane.b32.xlu0 %v1286, 32
    %v1289 = vpop.permute.xlu0 %1288
    %v1291 = vmul.f32 %v1274, %v1289
    %v1292 = vpack.c.bf16 %v1291, %v1291
    %v1293 = vld [vmem:[#allocation2] sm:$0xf]
    %v1294 = vld [vmem:[#allocation2 + $0x4] sm:$0xf]
    %v1295 = vld [vmem:[#allocation2 + $0x8] sm:$0xf]
    %v1296 = vld [vmem:[#allocation2 + $0xc] sm:$0xf]
    %v1297 = vld [vmem:[%s7] sm:$0x1]
    %v1299 = vlaneseq
    %v1300 = vshrl.u32 %v1299, 7
    %v1301 = vsub.s32 0, %v1300
    %v1302 = vrot.slane %v1297, %v1301
    %1305 = vrot.lane.b32.xlu0 %v1292, 64
    %v1306 = vpop.permute.xlu0 %1305
    %v1311 = vunpack.c.l.b16 %v1293
    %v1312 = vunpack.c.l.b16 %v1294
    %v1313 = vunpack.c.l.b16 %v1295
    %v1314 = vunpack.c.l.b16 %v1296
    %v1315 = vpack.c.b16 %v1312, %v1311
    %v1316 = vpack.c.b16 %v1314, %v1313
    %v1320 = vsel %vm155, %v1306, 0
    %1322 = vmatprep.subr.bf16.mxu0 0
    %1323 = vmatpush1.bf16.msra.mxu0 %v1315
    %1324 = vmatprep.subr.bf16.mxu0 0
    %1325 = vmatpush1.bf16.msra.mxu0 %v1316
    %1326 = vmatprep.subr.bf16.mxu0 0
    %1327 = vmatpush1.bf16.msra.mxu0 0
    %1328 = vmatprep.subr.bf16.mxu0 0
    %1329 = vmatpush1.bf16.msra.mxu0 0
    %1330 = vmatprep.subr.bf16.mxu0 0
    %1331 = vmatpush1.bf16.msra.mxu0 0
    %1332 = vmatprep.subr.bf16.mxu0 0
    %1333 = vmatpush1.bf16.msra.mxu0 0
    %1334 = vmatprep.subr.bf16.mxu0 0
    %1335 = vmatpush1.bf16.msra.mxu0 0
    %1336 = vmatprep.subr.bf16.mxu0 0
    %1337 = vmatpush1.bf16.msra.mxu0 0
    %1338 = vmatprep.subr.bf16.mxu0 0
    %1339 = vmatpush1.bf16.msra.mxu0 0
    %1340 = vmatprep.subr.bf16.mxu0 0
    %1341 = vmatpush1.bf16.msra.mxu0 0
    %1342 = vmatprep.subr.bf16.mxu0 0
    %1343 = vmatpush1.bf16.msra.mxu0 0
    %1344 = vmatprep.subr.bf16.mxu0 0
    %1345 = vmatpush1.bf16.msra.mxu0 0
    %1346 = vmatprep.subr.bf16.mxu0 0
    %1347 = vmatpush1.bf16.msra.mxu0 0
    %1348 = vmatprep.subr.bf16.mxu0 0
    %1349 = vmatpush1.bf16.msra.mxu0 0
    %1350 = vmatprep.subr.bf16.mxu0 0
    %1351 = vmatpush1.bf16.msra.mxu0 0
    %1352 = vmatprep.subr.bf16.mxu0 0
    %1353 = vmatpush1.bf16.msra.mxu0 0
    %1354 = vmatprep.mubr.bf16.mxu0 0
    %1355 = vmatmul.mubr.bf16.gmra.mrb[0].mxu0 %v1320
    %v1356 = vpop.f32.mrb[0].mxu0
    %v1357 = vadd.f32 %v1302, %v1356
    %v1358 = vpop.f32.mrb[0].mxu0
    %v1359 = vpop.f32.mrb[0].mxu0
    %v1360 = vpop.f32.mrb[0].mxu0
    %1361 = vdwg.mxu0
    %1362 = vst [vmem:[#allocation5] sm:$0x3] %v1357
    // Predicated region
    $region38: #{lstm_model_forward.1} parent=1 // pred_check
      _
    $region39: #{lstm_model_forward.1} parent=1 // pred_check_branch
      %1364 = sbr.rel (0) target = $region41
    $region40: #{lstm_model_forward.1} parent=1 // pred_region
      %s1366 = ssub.s32 32, 32
      %1367 = vsyncadd [#allocation4], %s1366
      %s1369 = sshll.u32 [#allocation5], 4
      %s1370 = int_to_ptr.vmem [resolvable:$true] %s1369
      %1372 = dma.vmem_to_hbm [thread:$0]  %s1370, 32, %s8, [#allocation4]
    $region41: #{lstm_model_forward.1} parent=1 // pred_fallthru
      _
    // Predicated region
    $region42: #{lstm_model_forward.1} parent=1 // pred_check
      _
    $region43: #{lstm_model_forward.1} parent=1 // pred_check_branch
      %1374 = sbr.rel (0) target = $region45
    $region44: #{lstm_model_forward.1} parent=1 // pred_region
      %1375 = dma.done [#allocation4], 32
    $region45: #{lstm_model_forward.1} parent=1 // pred_fallthru
      _
    %1376 = vsyncpa [#allocation3], 1
    %1377 = vsyncpa [#allocation4], 1

</llo_original>
